<compile_context>
chip_gen: v7x
topology: tpu7x:2x2x1
jax: 0.10.0
libtpu: 0.0.40
codegen_flags: <defaults>
</compile_context>

<pallas_src>
import jax
import jax.numpy as jnp
from jax.experimental import pallas as pl
from jax.experimental.pallas import tpu as pltpu

# Small example shapes consistent with the module (softmax dim=-3 => input has
# at least 3 dims; we use [batch, num_sources, seq, embed_dim]).
B = 2   # batch
N = 4   # number of embeddings being fused (softmax / reduction axis, dim=-3)
S = 8   # sequence / spatial axis carried through
E = 32  # embed_dim


def attention_fusion_kernel(emb_ref, wseg_ref, segt_ref, out_ref):
    """One batch element per grid step.

    emb_ref  : [N, S*E]  lane-dense embeddings (row n holds all S positions).
    wseg_ref : [S*E, S]  wseg[f, s] = w[f % E] if f // E == s else 0.
    segt_ref : [S, S*E]  one-hot group membership: segt[s, f] = (f // E == s).
    out_ref  : [1, S*E]  fused output, lane-dense store.
    """
    emb = emb_ref[...]                                        # [N, F] f32
    hp = jax.lax.Precision.HIGHEST

    # Linear(E, 1, bias=False) + regroup-to-position in one small MXU matmul.
    scores = jnp.dot(emb, wseg_ref[...], precision=hp,
                     preferred_element_type=jnp.float32)       # [N, S]

    # Softmax over the fusion axis N (== dim=-3 of the original [B, N, S, 1]).
    m = jnp.max(scores, axis=0, keepdims=True)                 # [1, S]
    e = jnp.exp(scores - m)                                    # [N, S]
    denom = jnp.sum(e, axis=0, keepdims=True)                  # [1, S]

    # EUP reciprocal + one Newton refinement (keeps ~f32 accuracy).
    inv = pl.reciprocal(denom, approx=True)
    inv = inv * (2.0 - denom * inv)                            # [1, S]

    # Broadcast per-(n,s) numerators / per-s inverse back onto the 32-lane
    # groups with an exact one-hot matmul (idle MXU; no masked VPU work).
    e_lanes = jnp.dot(e, segt_ref[...], precision=hp,
                      preferred_element_type=jnp.float32)      # [N, F]
    inv_lanes = jnp.dot(inv, segt_ref[...], precision=hp,
                        preferred_element_type=jnp.float32)    # [1, F]

    acc = jnp.sum(e_lanes * emb, axis=0, keepdims=True)        # [1, F]
    out_ref[...] = (acc * inv_lanes).astype(out_ref.dtype)     # lane-dense vst


def attention_fusion(embeddings, w):
    """embeddings: [B, N, S, E] f32; w: [1, E] (nn.Linear(E,1,bias=False).weight)."""
    b, n, s, e = embeddings.shape
    assert w.shape == (1, e)
    f = s * e  # lane-dense width (256 here, a multiple of 128)

    # HBM-side repack (contiguous -> free). Never reshape across (8,128) tile
    # boundaries inside the kernel.
    emb_flat = embeddings.reshape(b, n, f)

    # Fused projection / regroup matrices (tiny; VMEM-resident across the grid
    # because their index_map returns the same block every step).
    group = jnp.arange(f, dtype=jnp.int32) // e                          # [F]
    seg = (group[:, None] == jnp.arange(s, dtype=jnp.int32)[None, :])    # [F, S]
    seg = seg.astype(jnp.float32)
    wseg = seg * jnp.tile(w[0], (s,))[:, None]                           # [F, S]
    seg_t = jnp.transpose(seg)                                           # [S, F]

    out_flat = pl.pallas_call(
        attention_fusion_kernel,
        out_shape=jax.ShapeDtypeStruct((b, 1, f), jnp.float32),
        grid=(b,),  # B=2 -> exactly 2 parallel steps (one per v7x TensorCore).
        in_specs=[
            # One [N, F] slab per batch element (leading batch dim squeezed).
            pl.BlockSpec((pl.Squeezed(), n, f), lambda i: (i, 0, 0)),
            # Constant blocks: same index every step -> stay VMEM-resident.
            pl.BlockSpec((f, s), lambda i: (0, 0)),
            pl.BlockSpec((s, f), lambda i: (0, 0)),
        ],
        out_specs=pl.BlockSpec((pl.Squeezed(), 1, f), lambda i: (i, 0, 0)),
        compiler_params=pltpu.CompilerParams(
            dimension_semantics=("parallel",),
        ),
    )(emb_flat, wseg, seg_t)

    # Free, contiguous un-flatten back to [B, S, E].
    return out_flat.reshape(b, s, e)


def reference_forward(embeddings, w):
    """Pure-JAX mirror of the PyTorch forward, for verification."""
    scores = jnp.einsum("bnse,oe->bnso", embeddings, w)     # [B, N, S, 1]
    alpha = jax.nn.softmax(scores, axis=-3)
    return jnp.sum(alpha * embeddings, axis=-3)             # [B, S, E]


if __name__ == "__main__":
    key = jax.random.PRNGKey(0)
    k_emb, k_w = jax.random.split(key)

    embeddings = jax.random.normal(k_emb, (B, N, S, E), jnp.float32)
    # nn.Linear(E, 1, bias=False).weight has shape [1, E]
    w = 0.1 * jax.random.normal(k_w, (1, E), jnp.float32)

    out = attention_fusion(embeddings, w)
    out = jax.block_until_ready(out)

    ref = jax.block_until_ready(reference_forward(embeddings, w))
    assert out.shape == (B, S, E)
    assert jnp.allclose(out, ref, atol=1e-5, rtol=1e-5), "mismatch vs JAX reference"

    print("KERNEL_OK")
</pallas_src>

<mosaic_0001>
module attributes {stable_mosaic.version = 11 : i64} {
  func.func @attention_fusion_kernel(%arg0: i32, %arg1: memref<1x4x256xf32, #tpu.memory_space<vmem>>, %arg2: memref<256x8xf32, #tpu.memory_space<vmem>>, %arg3: memref<8x256xf32, #tpu.memory_space<vmem>>, %arg4: memref<1x1x256xf32, #tpu.memory_space<vmem>>) attributes {dimension_semantics = [#tpu.dimension_semantics<parallel>], iteration_bounds = array<i64: 2>, scalar_prefetch = 0 : i64, scratch_operands = 0 : i64, tpu.core_type = #tpu.core_type<tc>, window_params = [{transform_indices = @transform_0, window_bounds = array<i64: 1, 4, 256>}, {pipeline_mode = #tpu.pipeline_mode<synchronous>, transform_indices = @transform_1, window_bounds = array<i64: 256, 8>}, {pipeline_mode = #tpu.pipeline_mode<synchronous>, transform_indices = @transform_2, window_bounds = array<i64: 8, 256>}, {transform_indices = @transform_3, window_bounds = array<i64: 1, 1, 256>}]} {
    %c0 = arith.constant 0 : index
    %c0_0 = arith.constant 0 : index
    %c0_1 = arith.constant 0 : index
    %0 = vector.load %arg1[%c0, %c0_0, %c0_1] : memref<1x4x256xf32, #tpu.memory_space<vmem>>, vector<1x4x256xf32>
    %1 = vector.shape_cast %0 : vector<1x4x256xf32> to vector<4x256xf32>
    %c0_2 = arith.constant 0 : index
    %c0_3 = arith.constant 0 : index
    %2 = vector.load %arg2[%c0_2, %c0_3] : memref<256x8xf32, #tpu.memory_space<vmem>>, vector<256x8xf32>
    %cst = arith.constant dense<0.000000e+00> : vector<4x8xf32>
    %3 = tpu.matmul %1, %2, %cst {dimension_numbers = #tpu.dot_dimension_numbers<[1], [0], [0], [1], [0, 0, 1, 1], [], []>, precision = #tpu.contract_precision<fp32>} : vector<4x256xf32>, vector<256x8xf32>, vector<4x8xf32> -> vector<4x8xf32>
    %cst_4 = arith.constant dense<0xFF800000> : vector<8xf32>
    %4 = vector.multi_reduction <maximumf>, %3, %cst_4 [0] : vector<4x8xf32> to vector<8xf32>
    %5 = vector.shape_cast %4 : vector<8xf32> to vector<1x8xf32>
    %6 = vector.broadcast %5 : vector<1x8xf32> to vector<4x8xf32>
    %7 = arith.subf %3, %6 : vector<4x8xf32>
    %8 = math.exp %7 : vector<4x8xf32>
    %cst_5 = arith.constant dense<0.000000e+00> : vector<8xf32>
    %9 = vector.multi_reduction <add>, %8, %cst_5 [0] : vector<4x8xf32> to vector<8xf32>
    %10 = vector.shape_cast %9 : vector<8xf32> to vector<1x8xf32>
    %11 = tpu.reciprocal %10 {approx = true} : vector<1x8xf32> -> vector<1x8xf32>
    %12 = arith.mulf %10, %11 : vector<1x8xf32>
    %cst_6 = arith.constant 2.000000e+00 : f32
    %13 = vector.broadcast %cst_6 : f32 to vector<1x8xf32>
    %14 = arith.subf %13, %12 : vector<1x8xf32>
    %15 = arith.mulf %11, %14 : vector<1x8xf32>
    %c0_7 = arith.constant 0 : index
    %c0_8 = arith.constant 0 : index
    %16 = vector.load %arg3[%c0_7, %c0_8] : memref<8x256xf32, #tpu.memory_space<vmem>>, vector<8x256xf32>
    %cst_9 = arith.constant dense<0.000000e+00> : vector<4x256xf32>
    %17 = tpu.matmul %8, %16, %cst_9 {dimension_numbers = #tpu.dot_dimension_numbers<[1], [0], [0], [1], [0, 0, 1, 1], [], []>, precision = #tpu.contract_precision<fp32>} : vector<4x8xf32>, vector<8x256xf32>, vector<4x256xf32> -> vector<4x256xf32>
    %c0_10 = arith.constant 0 : index
    %c0_11 = arith.constant 0 : index
    %18 = vector.load %arg3[%c0_10, %c0_11] : memref<8x256xf32, #tpu.memory_space<vmem>>, vector<8x256xf32>
    %cst_12 = arith.constant dense<0.000000e+00> : vector<1x256xf32>
    %19 = tpu.matmul %15, %18, %cst_12 {dimension_numbers = #tpu.dot_dimension_numbers<[1], [0], [0], [1], [0, 0, 1, 1], [], []>, precision = #tpu.contract_precision<fp32>} : vector<1x8xf32>, vector<8x256xf32>, vector<1x256xf32> -> vector<1x256xf32>
    %20 = arith.mulf %17, %1 : vector<4x256xf32>
    %cst_13 = arith.constant dense<0.000000e+00> : vector<256xf32>
    %21 = vector.multi_reduction <add>, %20, %cst_13 [0] : vector<4x256xf32> to vector<256xf32>
    %22 = vector.shape_cast %21 : vector<256xf32> to vector<1x256xf32>
    %23 = arith.mulf %22, %19 : vector<1x256xf32>
    %c0_14 = arith.constant 0 : index
    %c0_15 = arith.constant 0 : index
    %c0_16 = arith.constant 0 : index
    %24 = vector.load %arg4[%c0_14, %c0_15, %c0_16] : memref<1x1x256xf32, #tpu.memory_space<vmem>>, vector<1x1x256xf32>
    %25 = vector.shape_cast %24 : vector<1x1x256xf32> to vector<1x256xf32>
    %26 = vector.shape_cast %23 : vector<1x256xf32> to vector<1x1x256xf32>
    tpu.vector_store %arg4[%c0_14, %c0_15, %c0_16], %26 {strides = array<i32>} : memref<1x1x256xf32, #tpu.memory_space<vmem>>, vector<1x1x256xf32>,
    return
  }
  func.func @transform_0(%arg0: i32) -> (i32, i32, i32) {
    %c0_i32 = arith.constant 0 : i32
    %c0_i32_0 = arith.constant 0 : i32
    %c0_i32_1 = arith.constant 0 : i32
    return %arg0, %c0_i32, %c0_i32_0 : i32, i32, i32
  }
  func.func @transform_1(%arg0: i32) -> (i32, i32) {
    %c0_i32 = arith.constant 0 : i32
    %c0_i32_0 = arith.constant 0 : i32
    %c0_i32_1 = arith.constant 0 : i32
    return %c0_i32, %c0_i32_0 : i32, i32
  }
  func.func @transform_2(%arg0: i32) -> (i32, i32) {
    %c0_i32 = arith.constant 0 : i32
    %c0_i32_0 = arith.constant 0 : i32
    %c0_i32_1 = arith.constant 0 : i32
    return %c0_i32, %c0_i32_0 : i32, i32
  }
  func.func @transform_3(%arg0: i32) -> (i32, i32, i32) {
    %c0_i32 = arith.constant 0 : i32
    %c0_i32_0 = arith.constant 0 : i32
    %c0_i32_1 = arith.constant 0 : i32
    return %arg0, %c0_i32, %c0_i32_0 : i32, i32, i32
  }
}

</mosaic_0001>

<llo_original>
// kernel: tpu_custom_call.1
$region0: #{tpu_custom_call.1}
  #allocation0 [shape = 'u32[]', space=smem, size = 0x4, offset = 0x4, fixed_abs, tag = 'smem constant byte address 0x4 - core index']
  #allocation1 [shape = 'u32[144,128]{1,0:T(1,128)}', space=vmem, size = 0x12000, scoped, tag = 'internal scratch']
  %s0 = inlined_call_operand.vmem [shape: f32[2,4,256], index: 0, kind: input, shape index: {}]
  %s1 = inlined_call_operand.vmem [shape: f32[256,8], index: 1, kind: input, shape index: {}]
  %s2 = inlined_call_operand.vmem [shape: f32[8,256], index: 2, kind: input, shape index: {}]
  %s3 = inlined_call_operand.hbm [shape: f32[2,1,256], index: 3, kind: output, shape index: {}]
  %s4 = sld [smem:[#allocation0]]
  $region45: #{tpu_custom_call.1} parent=0
    _
  %s6 = ssub.s32 1, %s4
  %s7 = scalar_select 0, %s6, %s4
  $region1: #{tpu_custom_call.1} parent=0
    #allocation2 [shape = 'u8[2048]{0}', space=vmem, size = 0x800, scoped, tag = 'output window, operand 0']
    #allocation3 [shape = 's32[2]{0}', space=sflag, size = 0x8, scoped, tag = 'scoped memory for tpu_custom_call.1']
    %8 = vsyncpa [#allocation3], 0
    %s9 = scalar_lea.sflag [#allocation3], 1
    %10 = vsyncpa %s9, 0
    loop: start=0, step=1, limit=4
    $region2: #{tpu_custom_call.1} parent=1 // loop_pre_header
      _
    $region3: #{tpu_custom_call.1} parent=1 // loop_header
      %s12 = sphi 0, %s16
      %p13 = scmp.ge.s32.totalorder %s12, 4
      %s22 = sphi 0, %s24
      %s25 = sphi 0, %s22
      %s26 = sphi 0, %s25
      %s42 = sphi 0, %s26
      %s46 = sphi 0, %s46
      %s48 = sphi 0, %s46
      %s49 = sphi 0, %s48
      %s63 = sphi 0, %s49
      %s67 = sphi 0, %s67
      %s69 = sphi 0, %s67
      %s70 = sphi 0, %s69
      %s84 = sphi 0, %s70
      %s90 = sphi 0, %s92
      %s93 = sphi 0, %s90
      %s94 = sphi 0, %s93
      %s110 = sphi 0, %s94
    $region4: #{tpu_custom_call.1} parent=1 // loop_header_branch
      %15 = sbr.rel (%p13) target = $region8
    $region5: #{tpu_custom_call.1} parent=1 // loop_body
      %s17 = ssub.s32 %s12, 1
      %s18 = ssub.s32 %s12, 2
      %s19 = sadd.s32 %s12, 1
      %s20 = ssub.s32 %s12, %s19
      %p21 = scmp.eq.s32.totalorder %s20, 0
      %s23 = sadd.s32 %s22, 1
      %s24 = scalar_select %p21, %s22, %s23
      %p27 = pneg %p21
      %p28 = scmp.eq.s32.totalorder %s12, 1
      %p29 = por %p27, %p28
      %p30 = scmp.ne.s32.totalorder %s22, %s25
      %p31 = scmp.eq.s32.totalorder %s12, 0
      %p32 = por %p30, %p31
      %p33 = scmp.ne.s32.totalorder %s22, %s25
      %p34 = scmp.eq.s32.totalorder %s17, 1
      %p35 = por %p33, %p34
      %p36 = scmp.ne.s32.totalorder %s25, %s26
      %p37 = scmp.eq.s32.totalorder %s17, 0
      %p38 = por %p36, %p37
      %p39 = scmp.ne.s32.totalorder %s25, %s26
      %p40 = scmp.eq.s32.totalorder %s18, 1
      %p41 = por %p39, %p40
      %p43 = scmp.ne.s32.totalorder %s26, %s42
      %p44 = scmp.eq.s32.totalorder %s18, 0
      %p45 = por %p43, %p44
      %s47 = sadd.s32 %s46, 1
      %p50 = scmp.eq.s32.totalorder %s12, 1
      %p51 = scmp.ne.s32.totalorder %s46, %s48
      %p52 = scmp.eq.s32.totalorder %s12, 0
      %p53 = por %p51, %p52
      %p54 = scmp.ne.s32.totalorder %s46, %s48
      %p55 = scmp.eq.s32.totalorder %s17, 1
      %p56 = por %p54, %p55
      %p57 = scmp.ne.s32.totalorder %s48, %s49
      %p58 = scmp.eq.s32.totalorder %s17, 0
      %p59 = por %p57, %p58
      %p60 = scmp.ne.s32.totalorder %s48, %s49
      %p61 = scmp.eq.s32.totalorder %s18, 1
      %p62 = por %p60, %p61
      %p64 = scmp.ne.s32.totalorder %s49, %s63
      %p65 = scmp.eq.s32.totalorder %s18, 0
      %p66 = por %p64, %p65
      %s68 = sadd.s32 %s67, 1
      %p71 = scmp.eq.s32.totalorder %s12, 1
      %p72 = scmp.ne.s32.totalorder %s67, %s69
      %p73 = scmp.eq.s32.totalorder %s12, 0
      %p74 = por %p72, %p73
      %p75 = scmp.ne.s32.totalorder %s67, %s69
      %p76 = scmp.eq.s32.totalorder %s17, 1
      %p77 = por %p75, %p76
      %p78 = scmp.ne.s32.totalorder %s69, %s70
      %p79 = scmp.eq.s32.totalorder %s17, 0
      %p80 = por %p78, %p79
      %p81 = scmp.ne.s32.totalorder %s69, %s70
      %p82 = scmp.eq.s32.totalorder %s18, 1
      %p83 = por %p81, %p82
      %p85 = scmp.ne.s32.totalorder %s70, %s84
      %p86 = scmp.eq.s32.totalorder %s18, 0
      %p87 = por %p85, %p86
      %s88 = ssub.s32 %s12, %s19
      %p89 = scmp.eq.s32.totalorder %s88, 0
      %s91 = sadd.s32 %s90, 1
      %s92 = scalar_select %p89, %s90, %s91
      %p95 = pneg %p89
      %p96 = scmp.eq.s32.totalorder %s12, 1
      %p97 = por %p95, %p96
      %p98 = scmp.ne.s32.totalorder %s90, %s93
      %p99 = scmp.eq.s32.totalorder %s12, 0
      %p100 = por %p98, %p99
      %p101 = scmp.ne.s32.totalorder %s90, %s93
      %p102 = scmp.eq.s32.totalorder %s17, 1
      %p103 = por %p101, %p102
      %p104 = scmp.ne.s32.totalorder %s93, %s94
      %p105 = scmp.eq.s32.totalorder %s17, 0
      %p106 = por %p104, %p105
      %p107 = scmp.ne.s32.totalorder %s93, %s94
      %p108 = scmp.eq.s32.totalorder %s18, 1
      %p109 = por %p107, %p108
      %p111 = scmp.ne.s32.totalorder %s94, %s110
      %p112 = scmp.eq.s32.totalorder %s18, 0
      %p113 = por %p111, %p112
      %p114 = scmp.le.s32.totalorder 1, %s12
      %p115 = scmp.lt.s32.totalorder %s12, 3
      %p116 = pnand %p114, %p115
      %p117 = pneg %p116
      // Predicated region
      $region9: #{tpu_custom_call.1} parent=5 // pred_check
        _
      $region10: #{tpu_custom_call.1} parent=5 // pred_check_branch
        %119 = sbr.rel (%p116) target = $region12
      $region11: #{tpu_custom_call.1} parent=5 // pred_region
        %s120 = ssub.s32 %s12, 1
        // Predicated region
        $region13: #{tpu_custom_call.1} parent=11 // pred_check
          %p121 = pneg %p59
        $region14: #{tpu_custom_call.1} parent=11 // pred_check_branch
          %123 = sbr.rel (%p121) target = $region16
        $region15: #{tpu_custom_call.1} parent=11 // pred_region
          _
        $region16: #{tpu_custom_call.1} parent=11 // pred_fallthru
          _
        // Predicated region
        $region17: #{tpu_custom_call.1} parent=11 // pred_check
          %p124 = pneg %p80
        $region18: #{tpu_custom_call.1} parent=11 // pred_check_branch
          %126 = sbr.rel (%p124) target = $region20
        $region19: #{tpu_custom_call.1} parent=11 // pred_region
          _
        $region20: #{tpu_custom_call.1} parent=11 // pred_fallthru
          _
      $region12: #{tpu_custom_call.1} parent=5 // pred_fallthru
        _
      %p127 = scmp.lt.s32.totalorder %s12, 2
      // Predicated region
      $region21: #{tpu_custom_call.1} parent=5 // pred_check
        %p128 = pneg %p127
      $region22: #{tpu_custom_call.1} parent=5 // pred_check_branch
        %130 = sbr.rel (%p128) target = $region24
      $region23: #{tpu_custom_call.1} parent=5 // pred_region
        // Predicated region
        $region25: #{tpu_custom_call.1} parent=23 // pred_check
          %p131 = pneg %p32
        $region26: #{tpu_custom_call.1} parent=23 // pred_check_branch
          %133 = sbr.rel (%p131) target = $region28
        $region27: #{tpu_custom_call.1} parent=23 // pred_region
          %p134 = scmp.lt.s32.totalorder %s12, 1
          %s135 = scalar_select %p134, %s12, 1
          %s136 = smul.addr %s135, 2
          %s137 = smul.addr %s136, 4
          %s138 = scalar_lea.vmem %s0, %s137
        $region28: #{tpu_custom_call.1} parent=23 // pred_fallthru
          _
      $region24: #{tpu_custom_call.1} parent=5 // pred_fallthru
        _
      %p139 = scmp.le.s32.totalorder 1, %s12
      %p140 = scmp.lt.s32.totalorder %s12, 3
      %p141 = pnand %p139, %p140
      %p142 = pneg %p141
      // Predicated region
      $region29: #{tpu_custom_call.1} parent=5 // pred_check
        _
      $region30: #{tpu_custom_call.1} parent=5 // pred_check_branch
        %144 = sbr.rel (%p141) target = $region32
      $region31: #{tpu_custom_call.1} parent=5 // pred_region
        %s145 = ssub.s32 %s12, 1
        %p146 = scmp.lt.s32.totalorder %s17, 1
        %s147 = scalar_select %p146, %s17, 1
        %s148 = smul.addr %s147, 2
        %s149 = smul.addr %s148, 4
        %s150 = scalar_lea.vmem %s0, %s149
        %p151 = pneg %p38
        %p152 = pneg %p35
        %p153 = pneg %p59
        %p154 = pneg %p56
        %p155 = pneg %p80
        %p156 = pneg %p77
        %p157 = pneg %p106
        %p158 = pneg %p103
        %s159 = sand.u32 %s93, 1
        %s160 = scalar_lea.sflag [#allocation3], %s159
        %s161 = sand.u32 %s93, 1
        %s162 = smul.addr %s161, 2
        %s163 = scalar_lea.vmem [#allocation2], %s162
        %p164 = scmp.lt.s32.totalorder %s17, 1
        %s165 = scalar_select %p164, %s17, 1
        %s166 = smul.addr %s165, 2
        %s167 = smul.addr %s166, 4
        %s168 = scalar_lea.vmem %s0, %s167
        %v169 = vld [vmem:[%s168] sm:$0xff]
        %v170 = vld [vmem:[%s1] sm:$0xff]
        %v171 = vld [vmem:[%s1 + $0x8] sm:$0xff]
        %v172 = vld [vmem:[%s1 + $0x10] sm:$0xff]
        %v173 = vld [vmem:[%s1 + $0x18] sm:$0xff]
        %v174 = vld [vmem:[%s1 + $0x20] sm:$0xff]
        %v175 = vld [vmem:[%s1 + $0x28] sm:$0xff]
        %v176 = vld [vmem:[%s1 + $0x30] sm:$0xff]
        %v177 = vld [vmem:[%s1 + $0x38] sm:$0xff]
        %v178 = vld [vmem:[%s1 + $0x40] sm:$0xff]
        %v179 = vld [vmem:[%s1 + $0x48] sm:$0xff]
        %v180 = vld [vmem:[%s1 + $0x50] sm:$0xff]
        %v181 = vld [vmem:[%s1 + $0x58] sm:$0xff]
        %v182 = vld [vmem:[%s1 + $0x60] sm:$0xff]
        %v183 = vld [vmem:[%s1 + $0x68] sm:$0xff]
        %v184 = vld [vmem:[%s1 + $0x70] sm:$0xff]
        %v185 = vld [vmem:[%s1 + $0x78] sm:$0xff]
        %v186 = vld [vmem:[%s1 + $0x80] sm:$0xff]
        %v187 = vld [vmem:[%s1 + $0x88] sm:$0xff]
        %v188 = vld [vmem:[%s1 + $0x90] sm:$0xff]
        %v189 = vld [vmem:[%s1 + $0x98] sm:$0xff]
        %v190 = vld [vmem:[%s1 + $0xa0] sm:$0xff]
        %v191 = vld [vmem:[%s1 + $0xa8] sm:$0xff]
        %v192 = vld [vmem:[%s1 + $0xb0] sm:$0xff]
        %v193 = vld [vmem:[%s1 + $0xb8] sm:$0xff]
        %v194 = vld [vmem:[%s1 + $0xc0] sm:$0xff]
        %v195 = vld [vmem:[%s1 + $0xc8] sm:$0xff]
        %v196 = vld [vmem:[%s1 + $0xd0] sm:$0xff]
        %v197 = vld [vmem:[%s1 + $0xd8] sm:$0xff]
        %v198 = vld [vmem:[%s1 + $0xe0] sm:$0xff]
        %v199 = vld [vmem:[%s1 + $0xe8] sm:$0xff]
        %v200 = vld [vmem:[%s1 + $0xf0] sm:$0xff]
        %v201 = vld [vmem:[%s1 + $0xf8] sm:$0xff]
        %v203 = vcombine.high %v169, %v169
        %205 = vmatprep.subr.mxu0 0.0
        %v206 = vand.u32 %v170, 4294901760
        %207 = vmatpush1.msra.mxu0 %v206
        %208 = vmatprep.subr.mxu0 0.0
        %v209 = vand.u32 %v171, 4294901760
        %210 = vmatpush1.msra.mxu0 %v209
        %211 = vmatprep.subr.mxu0 0.0
        %v212 = vand.u32 %v172, 4294901760
        %213 = vmatpush1.msra.mxu0 %v212
        %214 = vmatprep.subr.mxu0 0.0
        %v215 = vand.u32 %v173, 4294901760
        %216 = vmatpush1.msra.mxu0 %v215
        %217 = vmatprep.subr.mxu0 0.0
        %v218 = vand.u32 %v174, 4294901760
        %219 = vmatpush1.msra.mxu0 %v218
        %220 = vmatprep.subr.mxu0 0.0
        %v221 = vand.u32 %v175, 4294901760
        %222 = vmatpush1.msra.mxu0 %v221
        %223 = vmatprep.subr.mxu0 0.0
        %v224 = vand.u32 %v176, 4294901760
        %225 = vmatpush1.msra.mxu0 %v224
        %226 = vmatprep.subr.mxu0 0.0
        %v227 = vand.u32 %v177, 4294901760
        %228 = vmatpush1.msra.mxu0 %v227
        %229 = vmatprep.subr.mxu0 0.0
        %v230 = vand.u32 %v178, 4294901760
        %231 = vmatpush1.msra.mxu0 %v230
        %232 = vmatprep.subr.mxu0 0.0
        %v233 = vand.u32 %v179, 4294901760
        %234 = vmatpush1.msra.mxu0 %v233
        %235 = vmatprep.subr.mxu0 0.0
        %v236 = vand.u32 %v180, 4294901760
        %237 = vmatpush1.msra.mxu0 %v236
        %238 = vmatprep.subr.mxu0 0.0
        %v239 = vand.u32 %v181, 4294901760
        %240 = vmatpush1.msra.mxu0 %v239
        %241 = vmatprep.subr.mxu0 0.0
        %v242 = vand.u32 %v182, 4294901760
        %243 = vmatpush1.msra.mxu0 %v242
        %244 = vmatprep.subr.mxu0 0.0
        %v245 = vand.u32 %v183, 4294901760
        %246 = vmatpush1.msra.mxu0 %v245
        %247 = vmatprep.subr.mxu0 0.0
        %v248 = vand.u32 %v184, 4294901760
        %249 = vmatpush1.msra.mxu0 %v248
        %250 = vmatprep.subr.mxu0 0.0
        %v251 = vand.u32 %v185, 4294901760
        %252 = vmatpush1.msra.mxu0 %v251
        %253 = vmatprep.subr.mxu0 0.0
        %v254 = vand.u32 %v186, 4294901760
        %255 = vmatpush1.msra.mxu0 %v254
        %256 = vmatprep.subr.mxu0 0.0
        %v257 = vand.u32 %v187, 4294901760
        %258 = vmatpush1.msra.mxu0 %v257
        %259 = vmatprep.subr.mxu0 0.0
        %v260 = vand.u32 %v188, 4294901760
        %261 = vmatpush1.msra.mxu0 %v260
        %262 = vmatprep.subr.mxu0 0.0
        %v263 = vand.u32 %v189, 4294901760
        %264 = vmatpush1.msra.mxu0 %v263
        %265 = vmatprep.subr.mxu0 0.0
        %v266 = vand.u32 %v190, 4294901760
        %267 = vmatpush1.msra.mxu0 %v266
        %268 = vmatprep.subr.mxu0 0.0
        %v269 = vand.u32 %v191, 4294901760
        %270 = vmatpush1.msra.mxu0 %v269
        %271 = vmatprep.subr.mxu0 0.0
        %v272 = vand.u32 %v192, 4294901760
        %273 = vmatpush1.msra.mxu0 %v272
        %274 = vmatprep.subr.mxu0 0.0
        %v275 = vand.u32 %v193, 4294901760
        %276 = vmatpush1.msra.mxu0 %v275
        %277 = vmatprep.subr.mxu0 0.0
        %v278 = vand.u32 %v194, 4294901760
        %279 = vmatpush1.msra.mxu0 %v278
        %280 = vmatprep.subr.mxu0 0.0
        %v281 = vand.u32 %v195, 4294901760
        %282 = vmatpush1.msra.mxu0 %v281
        %283 = vmatprep.subr.mxu0 0.0
        %v284 = vand.u32 %v196, 4294901760
        %285 = vmatpush1.msra.mxu0 %v284
        %286 = vmatprep.subr.mxu0 0.0
        %v287 = vand.u32 %v197, 4294901760
        %288 = vmatpush1.msra.mxu0 %v287
        %289 = vmatprep.subr.mxu0 0.0
        %v290 = vand.u32 %v198, 4294901760
        %291 = vmatpush1.msra.mxu0 %v290
        %292 = vmatprep.subr.mxu0 0.0
        %v293 = vand.u32 %v199, 4294901760
        %294 = vmatpush1.msra.mxu0 %v293
        %295 = vmatprep.subr.mxu0 0.0
        %v296 = vand.u32 %v200, 4294901760
        %297 = vmatpush1.msra.mxu0 %v296
        %298 = vmatprep.subr.mxu0 0.0
        %v299 = vand.u32 %v201, 4294901760
        %300 = vmatpush1.msra.mxu0 %v299
        %v301 = vand.u32 %v203, 4294901760
        %v302 = vsub.f32 %v203, %v301
        %v303 = vand.u32 %v302, 4294901760
        %v304 = vsub.f32 %v302, %v303
        %v305 = vand.u32 %v304, 4294901760
        %306 = vmatprep.mubr.f32.mxu0 %v305
        %v307 = vand.u32 %v169, 4294901760
        %v308 = vsub.f32 %v169, %v307
        %v309 = vand.u32 %v308, 4294901760
        %v310 = vsub.f32 %v308, %v309
        %v311 = vand.u32 %v310, 4294901760
        %312 = vmatmul.mubr.f32.gmra.mrb[0].mxu0 %v311
        %v313 = vpop.f32.mrb[0].mxu0
        %v314 = vadd.f32 0.0, %v313
        %v315 = vpop.f32.mrb[0].mxu0
        %316 = vdwg.mxu0
        %317 = vmatprep.subr.mxu0 0.0
        %v318 = vand.u32 %v170, 4294901760
        %v319 = vsub.f32 %v170, %v318
        %v320 = vand.u32 %v319, 4294901760
        %v321 = vsub.f32 %v319, %v320
        %v322 = vand.u32 %v321, 4294901760
        %323 = vmatpush1.msra.mxu0 %v322
        %324 = vmatprep.subr.mxu0 0.0
        %v325 = vand.u32 %v171, 4294901760
        %v326 = vsub.f32 %v171, %v325
        %v327 = vand.u32 %v326, 4294901760
        %v328 = vsub.f32 %v326, %v327
        %v329 = vand.u32 %v328, 4294901760
        %330 = vmatpush1.msra.mxu0 %v329
        %331 = vmatprep.subr.mxu0 0.0
        %v332 = vand.u32 %v172, 4294901760
        %v333 = vsub.f32 %v172, %v332
        %v334 = vand.u32 %v333, 4294901760
        %v335 = vsub.f32 %v333, %v334
        %v336 = vand.u32 %v335, 4294901760
        %337 = vmatpush1.msra.mxu0 %v336
        %338 = vmatprep.subr.mxu0 0.0
        %v339 = vand.u32 %v173, 4294901760
        %v340 = vsub.f32 %v173, %v339
        %v341 = vand.u32 %v340, 4294901760
        %v342 = vsub.f32 %v340, %v341
        %v343 = vand.u32 %v342, 4294901760
        %344 = vmatpush1.msra.mxu0 %v343
        %345 = vmatprep.subr.mxu0 0.0
        %v346 = vand.u32 %v174, 4294901760
        %v347 = vsub.f32 %v174, %v346
        %v348 = vand.u32 %v347, 4294901760
        %v349 = vsub.f32 %v347, %v348
        %v350 = vand.u32 %v349, 4294901760
        %351 = vmatpush1.msra.mxu0 %v350
        %352 = vmatprep.subr.mxu0 0.0
        %v353 = vand.u32 %v175, 4294901760
        %v354 = vsub.f32 %v175, %v353
        %v355 = vand.u32 %v354, 4294901760
        %v356 = vsub.f32 %v354, %v355
        %v357 = vand.u32 %v356, 4294901760
        %358 = vmatpush1.msra.mxu0 %v357
        %359 = vmatprep.subr.mxu0 0.0
        %v360 = vand.u32 %v176, 4294901760
        %v361 = vsub.f32 %v176, %v360
        %v362 = vand.u32 %v361, 4294901760
        %v363 = vsub.f32 %v361, %v362
        %v364 = vand.u32 %v363, 4294901760
        %365 = vmatpush1.msra.mxu0 %v364
        %366 = vmatprep.subr.mxu0 0.0
        %v367 = vand.u32 %v177, 4294901760
        %v368 = vsub.f32 %v177, %v367
        %v369 = vand.u32 %v368, 4294901760
        %v370 = vsub.f32 %v368, %v369
        %v371 = vand.u32 %v370, 4294901760
        %372 = vmatpush1.msra.mxu0 %v371
        %373 = vmatprep.subr.mxu0 0.0
        %v374 = vand.u32 %v178, 4294901760
        %v375 = vsub.f32 %v178, %v374
        %v376 = vand.u32 %v375, 4294901760
        %v377 = vsub.f32 %v375, %v376
        %v378 = vand.u32 %v377, 4294901760
        %379 = vmatpush1.msra.mxu0 %v378
        %380 = vmatprep.subr.mxu0 0.0
        %v381 = vand.u32 %v179, 4294901760
        %v382 = vsub.f32 %v179, %v381
        %v383 = vand.u32 %v382, 4294901760
        %v384 = vsub.f32 %v382, %v383
        %v385 = vand.u32 %v384, 4294901760
        %386 = vmatpush1.msra.mxu0 %v385
        %387 = vmatprep.subr.mxu0 0.0
        %v388 = vand.u32 %v180, 4294901760
        %v389 = vsub.f32 %v180, %v388
        %v390 = vand.u32 %v389, 4294901760
        %v391 = vsub.f32 %v389, %v390
        %v392 = vand.u32 %v391, 4294901760
        %393 = vmatpush1.msra.mxu0 %v392
        %394 = vmatprep.subr.mxu0 0.0
        %v395 = vand.u32 %v181, 4294901760
        %v396 = vsub.f32 %v181, %v395
        %v397 = vand.u32 %v396, 4294901760
        %v398 = vsub.f32 %v396, %v397
        %v399 = vand.u32 %v398, 4294901760
        %400 = vmatpush1.msra.mxu0 %v399
        %401 = vmatprep.subr.mxu0 0.0
        %v402 = vand.u32 %v182, 4294901760
        %v403 = vsub.f32 %v182, %v402
        %v404 = vand.u32 %v403, 4294901760
        %v405 = vsub.f32 %v403, %v404
        %v406 = vand.u32 %v405, 4294901760
        %407 = vmatpush1.msra.mxu0 %v406
        %408 = vmatprep.subr.mxu0 0.0
        %v409 = vand.u32 %v183, 4294901760
        %v410 = vsub.f32 %v183, %v409
        %v411 = vand.u32 %v410, 4294901760
        %v412 = vsub.f32 %v410, %v411
        %v413 = vand.u32 %v412, 4294901760
        %414 = vmatpush1.msra.mxu0 %v413
        %415 = vmatprep.subr.mxu0 0.0
        %v416 = vand.u32 %v184, 4294901760
        %v417 = vsub.f32 %v184, %v416
        %v418 = vand.u32 %v417, 4294901760
        %v419 = vsub.f32 %v417, %v418
        %v420 = vand.u32 %v419, 4294901760
        %421 = vmatpush1.msra.mxu0 %v420
        %422 = vmatprep.subr.mxu0 0.0
        %v423 = vand.u32 %v185, 4294901760
        %v424 = vsub.f32 %v185, %v423
        %v425 = vand.u32 %v424, 4294901760
        %v426 = vsub.f32 %v424, %v425
        %v427 = vand.u32 %v426, 4294901760
        %428 = vmatpush1.msra.mxu0 %v427
        %429 = vmatprep.subr.mxu0 0.0
        %v430 = vand.u32 %v186, 4294901760
        %v431 = vsub.f32 %v186, %v430
        %v432 = vand.u32 %v431, 4294901760
        %v433 = vsub.f32 %v431, %v432
        %v434 = vand.u32 %v433, 4294901760
        %435 = vmatpush1.msra.mxu0 %v434
        %436 = vmatprep.subr.mxu0 0.0
        %v437 = vand.u32 %v187, 4294901760
        %v438 = vsub.f32 %v187, %v437
        %v439 = vand.u32 %v438, 4294901760
        %v440 = vsub.f32 %v438, %v439
        %v441 = vand.u32 %v440, 4294901760
        %442 = vmatpush1.msra.mxu0 %v441
        %443 = vmatprep.subr.mxu0 0.0
        %v444 = vand.u32 %v188, 4294901760
        %v445 = vsub.f32 %v188, %v444
        %v446 = vand.u32 %v445, 4294901760
        %v447 = vsub.f32 %v445, %v446
        %v448 = vand.u32 %v447, 4294901760
        %449 = vmatpush1.msra.mxu0 %v448
        %450 = vmatprep.subr.mxu0 0.0
        %v451 = vand.u32 %v189, 4294901760
        %v452 = vsub.f32 %v189, %v451
        %v453 = vand.u32 %v452, 4294901760
        %v454 = vsub.f32 %v452, %v453
        %v455 = vand.u32 %v454, 4294901760
        %456 = vmatpush1.msra.mxu0 %v455
        %457 = vmatprep.subr.mxu0 0.0
        %v458 = vand.u32 %v190, 4294901760
        %v459 = vsub.f32 %v190, %v458
        %v460 = vand.u32 %v459, 4294901760
        %v461 = vsub.f32 %v459, %v460
        %v462 = vand.u32 %v461, 4294901760
        %463 = vmatpush1.msra.mxu0 %v462
        %464 = vmatprep.subr.mxu0 0.0
        %v465 = vand.u32 %v191, 4294901760
        %v466 = vsub.f32 %v191, %v465
        %v467 = vand.u32 %v466, 4294901760
        %v468 = vsub.f32 %v466, %v467
        %v469 = vand.u32 %v468, 4294901760
        %470 = vmatpush1.msra.mxu0 %v469
        %471 = vmatprep.subr.mxu0 0.0
        %v472 = vand.u32 %v192, 4294901760
        %v473 = vsub.f32 %v192, %v472
        %v474 = vand.u32 %v473, 4294901760
        %v475 = vsub.f32 %v473, %v474
        %v476 = vand.u32 %v475, 4294901760
        %477 = vmatpush1.msra.mxu0 %v476
        %478 = vmatprep.subr.mxu0 0.0
        %v479 = vand.u32 %v193, 4294901760
        %v480 = vsub.f32 %v193, %v479
        %v481 = vand.u32 %v480, 4294901760
        %v482 = vsub.f32 %v480, %v481
        %v483 = vand.u32 %v482, 4294901760
        %484 = vmatpush1.msra.mxu0 %v483
        %485 = vmatprep.subr.mxu0 0.0
        %v486 = vand.u32 %v194, 4294901760
        %v487 = vsub.f32 %v194, %v486
        %v488 = vand.u32 %v487, 4294901760
        %v489 = vsub.f32 %v487, %v488
        %v490 = vand.u32 %v489, 4294901760
        %491 = vmatpush1.msra.mxu0 %v490
        %492 = vmatprep.subr.mxu0 0.0
        %v493 = vand.u32 %v195, 4294901760
        %v494 = vsub.f32 %v195, %v493
        %v495 = vand.u32 %v494, 4294901760
        %v496 = vsub.f32 %v494, %v495
        %v497 = vand.u32 %v496, 4294901760
        %498 = vmatpush1.msra.mxu0 %v497
        %499 = vmatprep.subr.mxu0 0.0
        %v500 = vand.u32 %v196, 4294901760
        %v501 = vsub.f32 %v196, %v500
        %v502 = vand.u32 %v501, 4294901760
        %v503 = vsub.f32 %v501, %v502
        %v504 = vand.u32 %v503, 4294901760
        %505 = vmatpush1.msra.mxu0 %v504
        %506 = vmatprep.subr.mxu0 0.0
        %v507 = vand.u32 %v197, 4294901760
        %v508 = vsub.f32 %v197, %v507
        %v509 = vand.u32 %v508, 4294901760
        %v510 = vsub.f32 %v508, %v509
        %v511 = vand.u32 %v510, 4294901760
        %512 = vmatpush1.msra.mxu0 %v511
        %513 = vmatprep.subr.mxu0 0.0
        %v514 = vand.u32 %v198, 4294901760
        %v515 = vsub.f32 %v198, %v514
        %v516 = vand.u32 %v515, 4294901760
        %v517 = vsub.f32 %v515, %v516
        %v518 = vand.u32 %v517, 4294901760
        %519 = vmatpush1.msra.mxu0 %v518
        %520 = vmatprep.subr.mxu0 0.0
        %v521 = vand.u32 %v199, 4294901760
        %v522 = vsub.f32 %v199, %v521
        %v523 = vand.u32 %v522, 4294901760
        %v524 = vsub.f32 %v522, %v523
        %v525 = vand.u32 %v524, 4294901760
        %526 = vmatpush1.msra.mxu0 %v525
        %527 = vmatprep.subr.mxu0 0.0
        %v528 = vand.u32 %v200, 4294901760
        %v529 = vsub.f32 %v200, %v528
        %v530 = vand.u32 %v529, 4294901760
        %v531 = vsub.f32 %v529, %v530
        %v532 = vand.u32 %v531, 4294901760
        %533 = vmatpush1.msra.mxu0 %v532
        %534 = vmatprep.subr.mxu0 0.0
        %v535 = vand.u32 %v201, 4294901760
        %v536 = vsub.f32 %v201, %v535
        %v537 = vand.u32 %v536, 4294901760
        %v538 = vsub.f32 %v536, %v537
        %v539 = vand.u32 %v538, 4294901760
        %540 = vmatpush1.msra.mxu0 %v539
        %v541 = vand.u32 %v203, 4294901760
        %542 = vmatprep.mubr.f32.mxu0 %v541
        %v543 = vand.u32 %v169, 4294901760
        %544 = vmatmul.mubr.f32.gmra.mrb[0].mxu0 %v543
        %v545 = vpop.f32.mrb[0].mxu0
        %v546 = vadd.f32 %v314, %v545
        %v547 = vpop.f32.mrb[0].mxu0
        %548 = vdwg.mxu0
        %549 = vmatprep.subr.mxu0 0.0
        %v550 = vand.u32 %v170, 4294901760
        %v551 = vsub.f32 %v170, %v550
        %552 = vmatpush1.msra.mxu0 %v551
        %553 = vmatprep.subr.mxu0 0.0
        %v554 = vand.u32 %v171, 4294901760
        %v555 = vsub.f32 %v171, %v554
        %556 = vmatpush1.msra.mxu0 %v555
        %557 = vmatprep.subr.mxu0 0.0
        %v558 = vand.u32 %v172, 4294901760
        %v559 = vsub.f32 %v172, %v558
        %560 = vmatpush1.msra.mxu0 %v559
        %561 = vmatprep.subr.mxu0 0.0
        %v562 = vand.u32 %v173, 4294901760
        %v563 = vsub.f32 %v173, %v562
        %564 = vmatpush1.msra.mxu0 %v563
        %565 = vmatprep.subr.mxu0 0.0
        %v566 = vand.u32 %v174, 4294901760
        %v567 = vsub.f32 %v174, %v566
        %568 = vmatpush1.msra.mxu0 %v567
        %569 = vmatprep.subr.mxu0 0.0
        %v570 = vand.u32 %v175, 4294901760
        %v571 = vsub.f32 %v175, %v570
        %572 = vmatpush1.msra.mxu0 %v571
        %573 = vmatprep.subr.mxu0 0.0
        %v574 = vand.u32 %v176, 4294901760
        %v575 = vsub.f32 %v176, %v574
        %576 = vmatpush1.msra.mxu0 %v575
        %577 = vmatprep.subr.mxu0 0.0
        %v578 = vand.u32 %v177, 4294901760
        %v579 = vsub.f32 %v177, %v578
        %580 = vmatpush1.msra.mxu0 %v579
        %581 = vmatprep.subr.mxu0 0.0
        %v582 = vand.u32 %v178, 4294901760
        %v583 = vsub.f32 %v178, %v582
        %584 = vmatpush1.msra.mxu0 %v583
        %585 = vmatprep.subr.mxu0 0.0
        %v586 = vand.u32 %v179, 4294901760
        %v587 = vsub.f32 %v179, %v586
        %588 = vmatpush1.msra.mxu0 %v587
        %589 = vmatprep.subr.mxu0 0.0
        %v590 = vand.u32 %v180, 4294901760
        %v591 = vsub.f32 %v180, %v590
        %592 = vmatpush1.msra.mxu0 %v591
        %593 = vmatprep.subr.mxu0 0.0
        %v594 = vand.u32 %v181, 4294901760
        %v595 = vsub.f32 %v181, %v594
        %596 = vmatpush1.msra.mxu0 %v595
        %597 = vmatprep.subr.mxu0 0.0
        %v598 = vand.u32 %v182, 4294901760
        %v599 = vsub.f32 %v182, %v598
        %600 = vmatpush1.msra.mxu0 %v599
        %601 = vmatprep.subr.mxu0 0.0
        %v602 = vand.u32 %v183, 4294901760
        %v603 = vsub.f32 %v183, %v602
        %604 = vmatpush1.msra.mxu0 %v603
        %605 = vmatprep.subr.mxu0 0.0
        %v606 = vand.u32 %v184, 4294901760
        %v607 = vsub.f32 %v184, %v606
        %608 = vmatpush1.msra.mxu0 %v607
        %609 = vmatprep.subr.mxu0 0.0
        %v610 = vand.u32 %v185, 4294901760
        %v611 = vsub.f32 %v185, %v610
        %612 = vmatpush1.msra.mxu0 %v611
        %613 = vmatprep.subr.mxu0 0.0
        %v614 = vand.u32 %v186, 4294901760
        %v615 = vsub.f32 %v186, %v614
        %616 = vmatpush1.msra.mxu0 %v615
        %617 = vmatprep.subr.mxu0 0.0
        %v618 = vand.u32 %v187, 4294901760
        %v619 = vsub.f32 %v187, %v618
        %620 = vmatpush1.msra.mxu0 %v619
        %621 = vmatprep.subr.mxu0 0.0
        %v622 = vand.u32 %v188, 4294901760
        %v623 = vsub.f32 %v188, %v622
        %624 = vmatpush1.msra.mxu0 %v623
        %625 = vmatprep.subr.mxu0 0.0
        %v626 = vand.u32 %v189, 4294901760
        %v627 = vsub.f32 %v189, %v626
        %628 = vmatpush1.msra.mxu0 %v627
        %629 = vmatprep.subr.mxu0 0.0
        %v630 = vand.u32 %v190, 4294901760
        %v631 = vsub.f32 %v190, %v630
        %632 = vmatpush1.msra.mxu0 %v631
        %633 = vmatprep.subr.mxu0 0.0
        %v634 = vand.u32 %v191, 4294901760
        %v635 = vsub.f32 %v191, %v634
        %636 = vmatpush1.msra.mxu0 %v635
        %637 = vmatprep.subr.mxu0 0.0
        %v638 = vand.u32 %v192, 4294901760
        %v639 = vsub.f32 %v192, %v638
        %640 = vmatpush1.msra.mxu0 %v639
        %641 = vmatprep.subr.mxu0 0.0
        %v642 = vand.u32 %v193, 4294901760
        %v643 = vsub.f32 %v193, %v642
        %644 = vmatpush1.msra.mxu0 %v643
        %645 = vmatprep.subr.mxu0 0.0
        %v646 = vand.u32 %v194, 4294901760
        %v647 = vsub.f32 %v194, %v646
        %648 = vmatpush1.msra.mxu0 %v647
        %649 = vmatprep.subr.mxu0 0.0
        %v650 = vand.u32 %v195, 4294901760
        %v651 = vsub.f32 %v195, %v650
        %652 = vmatpush1.msra.mxu0 %v651
        %653 = vmatprep.subr.mxu0 0.0
        %v654 = vand.u32 %v196, 4294901760
        %v655 = vsub.f32 %v196, %v654
        %656 = vmatpush1.msra.mxu0 %v655
        %657 = vmatprep.subr.mxu0 0.0
        %v658 = vand.u32 %v197, 4294901760
        %v659 = vsub.f32 %v197, %v658
        %660 = vmatpush1.msra.mxu0 %v659
        %661 = vmatprep.subr.mxu0 0.0
        %v662 = vand.u32 %v198, 4294901760
        %v663 = vsub.f32 %v198, %v662
        %664 = vmatpush1.msra.mxu0 %v663
        %665 = vmatprep.subr.mxu0 0.0
        %v666 = vand.u32 %v199, 4294901760
        %v667 = vsub.f32 %v199, %v666
        %668 = vmatpush1.msra.mxu0 %v667
        %669 = vmatprep.subr.mxu0 0.0
        %v670 = vand.u32 %v200, 4294901760
        %v671 = vsub.f32 %v200, %v670
        %672 = vmatpush1.msra.mxu0 %v671
        %673 = vmatprep.subr.mxu0 0.0
        %v674 = vand.u32 %v201, 4294901760
        %v675 = vsub.f32 %v201, %v674
        %676 = vmatpush1.msra.mxu0 %v675
        %v677 = vand.u32 %v203, 4294901760
        %v678 = vsub.f32 %v203, %v677
        %679 = vmatprep.mubr.f32.mxu0 %v678
        %v680 = vand.u32 %v169, 4294901760
        %v681 = vsub.f32 %v169, %v680
        %682 = vmatmul.mubr.f32.gmra.mrb[0].mxu0 %v681
        %v683 = vpop.f32.mrb[0].mxu0
        %v684 = vadd.f32 %v546, %v683
        %v685 = vpop.f32.mrb[0].mxu0
        %686 = vdwg.mxu0
        %687 = vmatprep.subr.mxu0 0.0
        %v688 = vand.u32 %v170, 4294901760
        %689 = vmatpush1.msra.mxu0 %v688
        %690 = vmatprep.subr.mxu0 0.0
        %v691 = vand.u32 %v171, 4294901760
        %692 = vmatpush1.msra.mxu0 %v691
        %693 = vmatprep.subr.mxu0 0.0
        %v694 = vand.u32 %v172, 4294901760
        %695 = vmatpush1.msra.mxu0 %v694
        %696 = vmatprep.subr.mxu0 0.0
        %v697 = vand.u32 %v173, 4294901760
        %698 = vmatpush1.msra.mxu0 %v697
        %699 = vmatprep.subr.mxu0 0.0
        %v700 = vand.u32 %v174, 4294901760
        %701 = vmatpush1.msra.mxu0 %v700
        %702 = vmatprep.subr.mxu0 0.0
        %v703 = vand.u32 %v175, 4294901760
        %704 = vmatpush1.msra.mxu0 %v703
        %705 = vmatprep.subr.mxu0 0.0
        %v706 = vand.u32 %v176, 4294901760
        %707 = vmatpush1.msra.mxu0 %v706
        %708 = vmatprep.subr.mxu0 0.0
        %v709 = vand.u32 %v177, 4294901760
        %710 = vmatpush1.msra.mxu0 %v709
        %711 = vmatprep.subr.mxu0 0.0
        %v712 = vand.u32 %v178, 4294901760
        %713 = vmatpush1.msra.mxu0 %v712
        %714 = vmatprep.subr.mxu0 0.0
        %v715 = vand.u32 %v179, 4294901760
        %716 = vmatpush1.msra.mxu0 %v715
        %717 = vmatprep.subr.mxu0 0.0
        %v718 = vand.u32 %v180, 4294901760
        %719 = vmatpush1.msra.mxu0 %v718
        %720 = vmatprep.subr.mxu0 0.0
        %v721 = vand.u32 %v181, 4294901760
        %722 = vmatpush1.msra.mxu0 %v721
        %723 = vmatprep.subr.mxu0 0.0
        %v724 = vand.u32 %v182, 4294901760
        %725 = vmatpush1.msra.mxu0 %v724
        %726 = vmatprep.subr.mxu0 0.0
        %v727 = vand.u32 %v183, 4294901760
        %728 = vmatpush1.msra.mxu0 %v727
        %729 = vmatprep.subr.mxu0 0.0
        %v730 = vand.u32 %v184, 4294901760
        %731 = vmatpush1.msra.mxu0 %v730
        %732 = vmatprep.subr.mxu0 0.0
        %v733 = vand.u32 %v185, 4294901760
        %734 = vmatpush1.msra.mxu0 %v733
        %735 = vmatprep.subr.mxu0 0.0
        %v736 = vand.u32 %v186, 4294901760
        %737 = vmatpush1.msra.mxu0 %v736
        %738 = vmatprep.subr.mxu0 0.0
        %v739 = vand.u32 %v187, 4294901760
        %740 = vmatpush1.msra.mxu0 %v739
        %741 = vmatprep.subr.mxu0 0.0
        %v742 = vand.u32 %v188, 4294901760
        %743 = vmatpush1.msra.mxu0 %v742
        %744 = vmatprep.subr.mxu0 0.0
        %v745 = vand.u32 %v189, 4294901760
        %746 = vmatpush1.msra.mxu0 %v745
        %747 = vmatprep.subr.mxu0 0.0
        %v748 = vand.u32 %v190, 4294901760
        %749 = vmatpush1.msra.mxu0 %v748
        %750 = vmatprep.subr.mxu0 0.0
        %v751 = vand.u32 %v191, 4294901760
        %752 = vmatpush1.msra.mxu0 %v751
        %753 = vmatprep.subr.mxu0 0.0
        %v754 = vand.u32 %v192, 4294901760
        %755 = vmatpush1.msra.mxu0 %v754
        %756 = vmatprep.subr.mxu0 0.0
        %v757 = vand.u32 %v193, 4294901760
        %758 = vmatpush1.msra.mxu0 %v757
        %759 = vmatprep.subr.mxu0 0.0
        %v760 = vand.u32 %v194, 4294901760
        %761 = vmatpush1.msra.mxu0 %v760
        %762 = vmatprep.subr.mxu0 0.0
        %v763 = vand.u32 %v195, 4294901760
        %764 = vmatpush1.msra.mxu0 %v763
        %765 = vmatprep.subr.mxu0 0.0
        %v766 = vand.u32 %v196, 4294901760
        %767 = vmatpush1.msra.mxu0 %v766
        %768 = vmatprep.subr.mxu0 0.0
        %v769 = vand.u32 %v197, 4294901760
        %770 = vmatpush1.msra.mxu0 %v769
        %771 = vmatprep.subr.mxu0 0.0
        %v772 = vand.u32 %v198, 4294901760
        %773 = vmatpush1.msra.mxu0 %v772
        %774 = vmatprep.subr.mxu0 0.0
        %v775 = vand.u32 %v199, 4294901760
        %776 = vmatpush1.msra.mxu0 %v775
        %777 = vmatprep.subr.mxu0 0.0
        %v778 = vand.u32 %v200, 4294901760
        %779 = vmatpush1.msra.mxu0 %v778
        %780 = vmatprep.subr.mxu0 0.0
        %v781 = vand.u32 %v201, 4294901760
        %782 = vmatpush1.msra.mxu0 %v781
        %v783 = vand.u32 %v203, 4294901760
        %v784 = vsub.f32 %v203, %v783
        %v785 = vand.u32 %v784, 4294901760
        %786 = vmatprep.mubr.f32.mxu0 %v785
        %v787 = vand.u32 %v169, 4294901760
        %v788 = vsub.f32 %v169, %v787
        %v789 = vand.u32 %v788, 4294901760
        %790 = vmatmul.mubr.f32.gmra.mrb[0].mxu0 %v789
        %v791 = vpop.f32.mrb[0].mxu0
        %v792 = vadd.f32 %v684, %v791
        %v793 = vpop.f32.mrb[0].mxu0
        %794 = vdwg.mxu0
        %795 = vmatprep.subr.mxu0 0.0
        %v796 = vand.u32 %v170, 4294901760
        %v797 = vsub.f32 %v170, %v796
        %v798 = vand.u32 %v797, 4294901760
        %799 = vmatpush1.msra.mxu0 %v798
        %800 = vmatprep.subr.mxu0 0.0
        %v801 = vand.u32 %v171, 4294901760
        %v802 = vsub.f32 %v171, %v801
        %v803 = vand.u32 %v802, 4294901760
        %804 = vmatpush1.msra.mxu0 %v803
        %805 = vmatprep.subr.mxu0 0.0
        %v806 = vand.u32 %v172, 4294901760
        %v807 = vsub.f32 %v172, %v806
        %v808 = vand.u32 %v807, 4294901760
        %809 = vmatpush1.msra.mxu0 %v808
        %810 = vmatprep.subr.mxu0 0.0
        %v811 = vand.u32 %v173, 4294901760
        %v812 = vsub.f32 %v173, %v811
        %v813 = vand.u32 %v812, 4294901760
        %814 = vmatpush1.msra.mxu0 %v813
        %815 = vmatprep.subr.mxu0 0.0
        %v816 = vand.u32 %v174, 4294901760
        %v817 = vsub.f32 %v174, %v816
        %v818 = vand.u32 %v817, 4294901760
        %819 = vmatpush1.msra.mxu0 %v818
        %820 = vmatprep.subr.mxu0 0.0
        %v821 = vand.u32 %v175, 4294901760
        %v822 = vsub.f32 %v175, %v821
        %v823 = vand.u32 %v822, 4294901760
        %824 = vmatpush1.msra.mxu0 %v823
        %825 = vmatprep.subr.mxu0 0.0
        %v826 = vand.u32 %v176, 4294901760
        %v827 = vsub.f32 %v176, %v826
        %v828 = vand.u32 %v827, 4294901760
        %829 = vmatpush1.msra.mxu0 %v828
        %830 = vmatprep.subr.mxu0 0.0
        %v831 = vand.u32 %v177, 4294901760
        %v832 = vsub.f32 %v177, %v831
        %v833 = vand.u32 %v832, 4294901760
        %834 = vmatpush1.msra.mxu0 %v833
        %835 = vmatprep.subr.mxu0 0.0
        %v836 = vand.u32 %v178, 4294901760
        %v837 = vsub.f32 %v178, %v836
        %v838 = vand.u32 %v837, 4294901760
        %839 = vmatpush1.msra.mxu0 %v838
        %840 = vmatprep.subr.mxu0 0.0
        %v841 = vand.u32 %v179, 4294901760
        %v842 = vsub.f32 %v179, %v841
        %v843 = vand.u32 %v842, 4294901760
        %844 = vmatpush1.msra.mxu0 %v843
        %845 = vmatprep.subr.mxu0 0.0
        %v846 = vand.u32 %v180, 4294901760
        %v847 = vsub.f32 %v180, %v846
        %v848 = vand.u32 %v847, 4294901760
        %849 = vmatpush1.msra.mxu0 %v848
        %850 = vmatprep.subr.mxu0 0.0
        %v851 = vand.u32 %v181, 4294901760
        %v852 = vsub.f32 %v181, %v851
        %v853 = vand.u32 %v852, 4294901760
        %854 = vmatpush1.msra.mxu0 %v853
        %855 = vmatprep.subr.mxu0 0.0
        %v856 = vand.u32 %v182, 4294901760
        %v857 = vsub.f32 %v182, %v856
        %v858 = vand.u32 %v857, 4294901760
        %859 = vmatpush1.msra.mxu0 %v858
        %860 = vmatprep.subr.mxu0 0.0
        %v861 = vand.u32 %v183, 4294901760
        %v862 = vsub.f32 %v183, %v861
        %v863 = vand.u32 %v862, 4294901760
        %864 = vmatpush1.msra.mxu0 %v863
        %865 = vmatprep.subr.mxu0 0.0
        %v866 = vand.u32 %v184, 4294901760
        %v867 = vsub.f32 %v184, %v866
        %v868 = vand.u32 %v867, 4294901760
        %869 = vmatpush1.msra.mxu0 %v868
        %870 = vmatprep.subr.mxu0 0.0
        %v871 = vand.u32 %v185, 4294901760
        %v872 = vsub.f32 %v185, %v871
        %v873 = vand.u32 %v872, 4294901760
        %874 = vmatpush1.msra.mxu0 %v873
        %875 = vmatprep.subr.mxu0 0.0
        %v876 = vand.u32 %v186, 4294901760
        %v877 = vsub.f32 %v186, %v876
        %v878 = vand.u32 %v877, 4294901760
        %879 = vmatpush1.msra.mxu0 %v878
        %880 = vmatprep.subr.mxu0 0.0
        %v881 = vand.u32 %v187, 4294901760
        %v882 = vsub.f32 %v187, %v881
        %v883 = vand.u32 %v882, 4294901760
        %884 = vmatpush1.msra.mxu0 %v883
        %885 = vmatprep.subr.mxu0 0.0
        %v886 = vand.u32 %v188, 4294901760
        %v887 = vsub.f32 %v188, %v886
        %v888 = vand.u32 %v887, 4294901760
        %889 = vmatpush1.msra.mxu0 %v888
        %890 = vmatprep.subr.mxu0 0.0
        %v891 = vand.u32 %v189, 4294901760
        %v892 = vsub.f32 %v189, %v891
        %v893 = vand.u32 %v892, 4294901760
        %894 = vmatpush1.msra.mxu0 %v893
        %895 = vmatprep.subr.mxu0 0.0
        %v896 = vand.u32 %v190, 4294901760
        %v897 = vsub.f32 %v190, %v896
        %v898 = vand.u32 %v897, 4294901760
        %899 = vmatpush1.msra.mxu0 %v898
        %900 = vmatprep.subr.mxu0 0.0
        %v901 = vand.u32 %v191, 4294901760
        %v902 = vsub.f32 %v191, %v901
        %v903 = vand.u32 %v902, 4294901760
        %904 = vmatpush1.msra.mxu0 %v903
        %905 = vmatprep.subr.mxu0 0.0
        %v906 = vand.u32 %v192, 4294901760
        %v907 = vsub.f32 %v192, %v906
        %v908 = vand.u32 %v907, 4294901760
        %909 = vmatpush1.msra.mxu0 %v908
        %910 = vmatprep.subr.mxu0 0.0
        %v911 = vand.u32 %v193, 4294901760
        %v912 = vsub.f32 %v193, %v911
        %v913 = vand.u32 %v912, 4294901760
        %914 = vmatpush1.msra.mxu0 %v913
        %915 = vmatprep.subr.mxu0 0.0
        %v916 = vand.u32 %v194, 4294901760
        %v917 = vsub.f32 %v194, %v916
        %v918 = vand.u32 %v917, 4294901760
        %919 = vmatpush1.msra.mxu0 %v918
        %920 = vmatprep.subr.mxu0 0.0
        %v921 = vand.u32 %v195, 4294901760
        %v922 = vsub.f32 %v195, %v921
        %v923 = vand.u32 %v922, 4294901760
        %924 = vmatpush1.msra.mxu0 %v923
        %925 = vmatprep.subr.mxu0 0.0
        %v926 = vand.u32 %v196, 4294901760
        %v927 = vsub.f32 %v196, %v926
        %v928 = vand.u32 %v927, 4294901760
        %929 = vmatpush1.msra.mxu0 %v928
        %930 = vmatprep.subr.mxu0 0.0
        %v931 = vand.u32 %v197, 4294901760
        %v932 = vsub.f32 %v197, %v931
        %v933 = vand.u32 %v932, 4294901760
        %934 = vmatpush1.msra.mxu0 %v933
        %935 = vmatprep.subr.mxu0 0.0
        %v936 = vand.u32 %v198, 4294901760
        %v937 = vsub.f32 %v198, %v936
        %v938 = vand.u32 %v937, 4294901760
        %939 = vmatpush1.msra.mxu0 %v938
        %940 = vmatprep.subr.mxu0 0.0
        %v941 = vand.u32 %v199, 4294901760
        %v942 = vsub.f32 %v199, %v941
        %v943 = vand.u32 %v942, 4294901760
        %944 = vmatpush1.msra.mxu0 %v943
        %945 = vmatprep.subr.mxu0 0.0
        %v946 = vand.u32 %v200, 4294901760
        %v947 = vsub.f32 %v200, %v946
        %v948 = vand.u32 %v947, 4294901760
        %949 = vmatpush1.msra.mxu0 %v948
        %950 = vmatprep.subr.mxu0 0.0
        %v951 = vand.u32 %v201, 4294901760
        %v952 = vsub.f32 %v201, %v951
        %v953 = vand.u32 %v952, 4294901760
        %954 = vmatpush1.msra.mxu0 %v953
        %v955 = vand.u32 %v203, 4294901760
        %956 = vmatprep.mubr.f32.mxu0 %v955
        %v957 = vand.u32 %v169, 4294901760
        %958 = vmatmul.mubr.f32.gmra.mrb[0].mxu0 %v957
        %v959 = vpop.f32.mrb[0].mxu0
        %v960 = vadd.f32 %v792, %v959
        %v961 = vpop.f32.mrb[0].mxu0
        %962 = vdwg.mxu0
        %963 = vmatprep.subr.mxu0 0.0
        %v964 = vand.u32 %v170, 4294901760
        %965 = vmatpush1.msra.mxu0 %v964
        %966 = vmatprep.subr.mxu0 0.0
        %v967 = vand.u32 %v171, 4294901760
        %968 = vmatpush1.msra.mxu0 %v967
        %969 = vmatprep.subr.mxu0 0.0
        %v970 = vand.u32 %v172, 4294901760
        %971 = vmatpush1.msra.mxu0 %v970
        %972 = vmatprep.subr.mxu0 0.0
        %v973 = vand.u32 %v173, 4294901760
        %974 = vmatpush1.msra.mxu0 %v973
        %975 = vmatprep.subr.mxu0 0.0
        %v976 = vand.u32 %v174, 4294901760
        %977 = vmatpush1.msra.mxu0 %v976
        %978 = vmatprep.subr.mxu0 0.0
        %v979 = vand.u32 %v175, 4294901760
        %980 = vmatpush1.msra.mxu0 %v979
        %981 = vmatprep.subr.mxu0 0.0
        %v982 = vand.u32 %v176, 4294901760
        %983 = vmatpush1.msra.mxu0 %v982
        %984 = vmatprep.subr.mxu0 0.0
        %v985 = vand.u32 %v177, 4294901760
        %986 = vmatpush1.msra.mxu0 %v985
        %987 = vmatprep.subr.mxu0 0.0
        %v988 = vand.u32 %v178, 4294901760
        %989 = vmatpush1.msra.mxu0 %v988
        %990 = vmatprep.subr.mxu0 0.0
        %v991 = vand.u32 %v179, 4294901760
        %992 = vmatpush1.msra.mxu0 %v991
        %993 = vmatprep.subr.mxu0 0.0
        %v994 = vand.u32 %v180, 4294901760
        %995 = vmatpush1.msra.mxu0 %v994
        %996 = vmatprep.subr.mxu0 0.0
        %v997 = vand.u32 %v181, 4294901760
        %998 = vmatpush1.msra.mxu0 %v997
        %999 = vmatprep.subr.mxu0 0.0
        %v1000 = vand.u32 %v182, 4294901760
        %1001 = vmatpush1.msra.mxu0 %v1000
        %1002 = vmatprep.subr.mxu0 0.0
        %v1003 = vand.u32 %v183, 4294901760
        %1004 = vmatpush1.msra.mxu0 %v1003
        %1005 = vmatprep.subr.mxu0 0.0
        %v1006 = vand.u32 %v184, 4294901760
        %1007 = vmatpush1.msra.mxu0 %v1006
        %1008 = vmatprep.subr.mxu0 0.0
        %v1009 = vand.u32 %v185, 4294901760
        %1010 = vmatpush1.msra.mxu0 %v1009
        %1011 = vmatprep.subr.mxu0 0.0
        %v1012 = vand.u32 %v186, 4294901760
        %1013 = vmatpush1.msra.mxu0 %v1012
        %1014 = vmatprep.subr.mxu0 0.0
        %v1015 = vand.u32 %v187, 4294901760
        %1016 = vmatpush1.msra.mxu0 %v1015
        %1017 = vmatprep.subr.mxu0 0.0
        %v1018 = vand.u32 %v188, 4294901760
        %1019 = vmatpush1.msra.mxu0 %v1018
        %1020 = vmatprep.subr.mxu0 0.0
        %v1021 = vand.u32 %v189, 4294901760
        %1022 = vmatpush1.msra.mxu0 %v1021
        %1023 = vmatprep.subr.mxu0 0.0
        %v1024 = vand.u32 %v190, 4294901760
        %1025 = vmatpush1.msra.mxu0 %v1024
        %1026 = vmatprep.subr.mxu0 0.0
        %v1027 = vand.u32 %v191, 4294901760
        %1028 = vmatpush1.msra.mxu0 %v1027
        %1029 = vmatprep.subr.mxu0 0.0
        %v1030 = vand.u32 %v192, 4294901760
        %1031 = vmatpush1.msra.mxu0 %v1030
        %1032 = vmatprep.subr.mxu0 0.0
        %v1033 = vand.u32 %v193, 4294901760
        %1034 = vmatpush1.msra.mxu0 %v1033
        %1035 = vmatprep.subr.mxu0 0.0
        %v1036 = vand.u32 %v194, 4294901760
        %1037 = vmatpush1.msra.mxu0 %v1036
        %1038 = vmatprep.subr.mxu0 0.0
        %v1039 = vand.u32 %v195, 4294901760
        %1040 = vmatpush1.msra.mxu0 %v1039
        %1041 = vmatprep.subr.mxu0 0.0
        %v1042 = vand.u32 %v196, 4294901760
        %1043 = vmatpush1.msra.mxu0 %v1042
        %1044 = vmatprep.subr.mxu0 0.0
        %v1045 = vand.u32 %v197, 4294901760
        %1046 = vmatpush1.msra.mxu0 %v1045
        %1047 = vmatprep.subr.mxu0 0.0
        %v1048 = vand.u32 %v198, 4294901760
        %1049 = vmatpush1.msra.mxu0 %v1048
        %1050 = vmatprep.subr.mxu0 0.0
        %v1051 = vand.u32 %v199, 4294901760
        %1052 = vmatpush1.msra.mxu0 %v1051
        %1053 = vmatprep.subr.mxu0 0.0
        %v1054 = vand.u32 %v200, 4294901760
        %1055 = vmatpush1.msra.mxu0 %v1054
        %1056 = vmatprep.subr.mxu0 0.0
        %v1057 = vand.u32 %v201, 4294901760
        %1058 = vmatpush1.msra.mxu0 %v1057
        %v1059 = vand.u32 %v203, 4294901760
        %1060 = vmatprep.mubr.f32.mxu0 %v1059
        %v1061 = vand.u32 %v169, 4294901760
        %1062 = vmatmul.mubr.f32.gmra.mrb[0].mxu0 %v1061
        %v1063 = vpop.f32.mrb[0].mxu0
        %v1064 = vadd.f32 %v960, %v1063
        %v1065 = vpop.f32.mrb[0].mxu0
        %1066 = vdwg.mxu0
        %vm1067 = vcmask 60416
        %v1068 = vsel %vm1067, %v1064, -inf
        %v1069 = vrot.slane %v1068, 4
        %v1070 = vmax.f32 %v1068, %v1069
        %v1071 = vrot.slane %v1070, 2
        %v1072 = vmax.f32 %v1070, %v1071
        %v1073 = vrot.slane %v1072, 1
        %v1074 = vmax.f32 %v1072, %v1073
        %v1075 = vsub.f32 %v1064, %v1074
        %v1076 = vmul.f32 %v1075, 1.442695
        %v1077 = vpow.pop %v1076
        %v1078 = vsel %vm1067, %v1077, 0.0
        %v1079 = vrot.slane %v1078, 4
        %v1080 = vadd.f32 %v1078, %v1079
        %v1081 = vrot.slane %v1080, 2
        %v1082 = vadd.f32 %v1080, %v1081
        %v1083 = vrot.slane %v1082, 1
        %v1084 = vadd.f32 %v1082, %v1083
        %v1085 = vrcp.pop %v1084
        %v1086 = vmul.f32 %v1084, %v1085
        %v1087 = vsub.f32 2.0, %v1086
        %v1088 = vmul.f32 %v1085, %v1087
        %v1089 = vld [vmem:[%s2] sm:$0xff]
        %v1090 = vld [vmem:[%s2 + $0x8] sm:$0xff]
        %vm1091 = vcmask 64512
        %v1093 = vsel %vm1091, %v1077, 0
        %v1095 = vand.u32 %v1090, 4294901760
        %1096 = vmatprep.subr.mxu0 %v1095
        %v1097 = vand.u32 %v1089, 4294901760
        %1098 = vmatpush1.msra.mxu0 %v1097
        %1099 = vmatprep.subr.mxu0 0.0
        %1100 = vmatpush1.msra.mxu0 0.0
        %1101 = vmatprep.subr.mxu0 0.0
        %1102 = vmatpush1.msra.mxu0 0.0
        %1103 = vmatprep.subr.mxu0 0.0
        %1104 = vmatpush1.msra.mxu0 0.0
        %1105 = vmatprep.subr.mxu0 0.0
        %1106 = vmatpush1.msra.mxu0 0.0
        %1107 = vmatprep.subr.mxu0 0.0
        %1108 = vmatpush1.msra.mxu0 0.0
        %1109 = vmatprep.subr.mxu0 0.0
        %1110 = vmatpush1.msra.mxu0 0.0
        %1111 = vmatprep.subr.mxu0 0.0
        %1112 = vmatpush1.msra.mxu0 0.0
        %1113 = vmatprep.subr.mxu0 0.0
        %1114 = vmatpush1.msra.mxu0 0.0
        %1115 = vmatprep.subr.mxu0 0.0
        %1116 = vmatpush1.msra.mxu0 0.0
        %1117 = vmatprep.subr.mxu0 0.0
        %1118 = vmatpush1.msra.mxu0 0.0
        %1119 = vmatprep.subr.mxu0 0.0
        %1120 = vmatpush1.msra.mxu0 0.0
        %1121 = vmatprep.subr.mxu0 0.0
        %1122 = vmatpush1.msra.mxu0 0.0
        %1123 = vmatprep.subr.mxu0 0.0
        %1124 = vmatpush1.msra.mxu0 0.0
        %1125 = vmatprep.subr.mxu0 0.0
        %1126 = vmatpush1.msra.mxu0 0.0
        %1127 = vmatprep.subr.mxu0 0.0
        %1128 = vmatpush1.msra.mxu0 0.0
        %1129 = vmatprep.subr.mxu0 0.0
        %1130 = vmatpush1.msra.mxu0 0.0
        %1131 = vmatprep.subr.mxu0 0.0
        %1132 = vmatpush1.msra.mxu0 0.0
        %1133 = vmatprep.subr.mxu0 0.0
        %1134 = vmatpush1.msra.mxu0 0.0
        %1135 = vmatprep.subr.mxu0 0.0
        %1136 = vmatpush1.msra.mxu0 0.0
        %1137 = vmatprep.subr.mxu0 0.0
        %1138 = vmatpush1.msra.mxu0 0.0
        %1139 = vmatprep.subr.mxu0 0.0
        %1140 = vmatpush1.msra.mxu0 0.0
        %1141 = vmatprep.subr.mxu0 0.0
        %1142 = vmatpush1.msra.mxu0 0.0
        %1143 = vmatprep.subr.mxu0 0.0
        %1144 = vmatpush1.msra.mxu0 0.0
        %1145 = vmatprep.subr.mxu0 0.0
        %1146 = vmatpush1.msra.mxu0 0.0
        %1147 = vmatprep.subr.mxu0 0.0
        %1148 = vmatpush1.msra.mxu0 0.0
        %1149 = vmatprep.subr.mxu0 0.0
        %1150 = vmatpush1.msra.mxu0 0.0
        %1151 = vmatprep.subr.mxu0 0.0
        %1152 = vmatpush1.msra.mxu0 0.0
        %1153 = vmatprep.subr.mxu0 0.0
        %1154 = vmatpush1.msra.mxu0 0.0
        %1155 = vmatprep.subr.mxu0 0.0
        %1156 = vmatpush1.msra.mxu0 0.0
        %1157 = vmatprep.subr.mxu0 0.0
        %1158 = vmatpush1.msra.mxu0 0.0
        %1159 = vmatprep.subr.mxu0 0.0
        %1160 = vmatpush1.msra.mxu0 0.0
        %1161 = vmatprep.mubr.f32.mxu0 0.0
        %v1162 = vand.u32 %v1093, 4294901760
        %v1163 = vsub.f32 %v1093, %v1162
        %v1164 = vand.u32 %v1163, 4294901760
        %v1165 = vsub.f32 %v1163, %v1164
        %v1166 = vand.u32 %v1165, 4294901760
        %1167 = vmatmul.mubr.f32.gmra.mrb[0].mxu0 %v1166
        %v1168 = vpop.f32.mrb[0].mxu0
        %v1169 = vadd.f32 0.0, %v1168
        %v1170 = vpop.f32.mrb[0].mxu0
        %v1171 = vadd.f32 0.0, %v1170
        %1172 = vdwg.mxu0
        %v1173 = vand.u32 %v1090, 4294901760
        %v1174 = vsub.f32 %v1090, %v1173
        %v1175 = vand.u32 %v1174, 4294901760
        %v1176 = vsub.f32 %v1174, %v1175
        %v1177 = vand.u32 %v1176, 4294901760
        %1178 = vmatprep.subr.mxu0 %v1177
        %v1179 = vand.u32 %v1089, 4294901760
        %v1180 = vsub.f32 %v1089, %v1179
        %v1181 = vand.u32 %v1180, 4294901760
        %v1182 = vsub.f32 %v1180, %v1181
        %v1183 = vand.u32 %v1182, 4294901760
        %1184 = vmatpush1.msra.mxu0 %v1183
        %1185 = vmatprep.subr.mxu0 0.0
        %1186 = vmatpush1.msra.mxu0 0.0
        %1187 = vmatprep.subr.mxu0 0.0
        %1188 = vmatpush1.msra.mxu0 0.0
        %1189 = vmatprep.subr.mxu0 0.0
        %1190 = vmatpush1.msra.mxu0 0.0
        %1191 = vmatprep.subr.mxu0 0.0
        %1192 = vmatpush1.msra.mxu0 0.0
        %1193 = vmatprep.subr.mxu0 0.0
        %1194 = vmatpush1.msra.mxu0 0.0
        %1195 = vmatprep.subr.mxu0 0.0
        %1196 = vmatpush1.msra.mxu0 0.0
        %1197 = vmatprep.subr.mxu0 0.0
        %1198 = vmatpush1.msra.mxu0 0.0
        %1199 = vmatprep.subr.mxu0 0.0
        %1200 = vmatpush1.msra.mxu0 0.0
        %1201 = vmatprep.subr.mxu0 0.0
        %1202 = vmatpush1.msra.mxu0 0.0
        %1203 = vmatprep.subr.mxu0 0.0
        %1204 = vmatpush1.msra.mxu0 0.0
        %1205 = vmatprep.subr.mxu0 0.0
        %1206 = vmatpush1.msra.mxu0 0.0
        %1207 = vmatprep.subr.mxu0 0.0
        %1208 = vmatpush1.msra.mxu0 0.0
        %1209 = vmatprep.subr.mxu0 0.0
        %1210 = vmatpush1.msra.mxu0 0.0
        %1211 = vmatprep.subr.mxu0 0.0
        %1212 = vmatpush1.msra.mxu0 0.0
        %1213 = vmatprep.subr.mxu0 0.0
        %1214 = vmatpush1.msra.mxu0 0.0
        %1215 = vmatprep.subr.mxu0 0.0
        %1216 = vmatpush1.msra.mxu0 0.0
        %1217 = vmatprep.subr.mxu0 0.0
        %1218 = vmatpush1.msra.mxu0 0.0
        %1219 = vmatprep.subr.mxu0 0.0
        %1220 = vmatpush1.msra.mxu0 0.0
        %1221 = vmatprep.subr.mxu0 0.0
        %1222 = vmatpush1.msra.mxu0 0.0
        %1223 = vmatprep.subr.mxu0 0.0
        %1224 = vmatpush1.msra.mxu0 0.0
        %1225 = vmatprep.subr.mxu0 0.0
        %1226 = vmatpush1.msra.mxu0 0.0
        %1227 = vmatprep.subr.mxu0 0.0
        %1228 = vmatpush1.msra.mxu0 0.0
        %1229 = vmatprep.subr.mxu0 0.0
        %1230 = vmatpush1.msra.mxu0 0.0
        %1231 = vmatprep.subr.mxu0 0.0
        %1232 = vmatpush1.msra.mxu0 0.0
        %1233 = vmatprep.subr.mxu0 0.0
        %1234 = vmatpush1.msra.mxu0 0.0
        %1235 = vmatprep.subr.mxu0 0.0
        %1236 = vmatpush1.msra.mxu0 0.0
        %1237 = vmatprep.subr.mxu0 0.0
        %1238 = vmatpush1.msra.mxu0 0.0
        %1239 = vmatprep.subr.mxu0 0.0
        %1240 = vmatpush1.msra.mxu0 0.0
        %1241 = vmatprep.subr.mxu0 0.0
        %1242 = vmatpush1.msra.mxu0 0.0
        %1243 = vmatprep.subr.mxu0 0.0
        %1244 = vmatpush1.msra.mxu0 0.0
        %1245 = vmatprep.subr.mxu0 0.0
        %1246 = vmatpush1.msra.mxu0 0.0
        %1247 = vmatprep.mubr.f32.mxu0 0.0
        %v1248 = vand.u32 %v1093, 4294901760
        %1249 = vmatmul.mubr.f32.gmra.mrb[0].mxu0 %v1248
        %v1250 = vpop.f32.mrb[0].mxu0
        %v1251 = vadd.f32 %v1169, %v1250
        %v1252 = vpop.f32.mrb[0].mxu0
        %v1253 = vadd.f32 %v1171, %v1252
        %1254 = vdwg.mxu0
        %v1255 = vand.u32 %v1090, 4294901760
        %v1256 = vsub.f32 %v1090, %v1255
        %1257 = vmatprep.subr.mxu0 %v1256
        %v1258 = vand.u32 %v1089, 4294901760
        %v1259 = vsub.f32 %v1089, %v1258
        %1260 = vmatpush1.msra.mxu0 %v1259
        %1261 = vmatprep.subr.mxu0 0.0
        %1262 = vmatpush1.msra.mxu0 0.0
        %1263 = vmatprep.subr.mxu0 0.0
        %1264 = vmatpush1.msra.mxu0 0.0
        %1265 = vmatprep.subr.mxu0 0.0
        %1266 = vmatpush1.msra.mxu0 0.0
        %1267 = vmatprep.subr.mxu0 0.0
        %1268 = vmatpush1.msra.mxu0 0.0
        %1269 = vmatprep.subr.mxu0 0.0
        %1270 = vmatpush1.msra.mxu0 0.0
        %1271 = vmatprep.subr.mxu0 0.0
        %1272 = vmatpush1.msra.mxu0 0.0
        %1273 = vmatprep.subr.mxu0 0.0
        %1274 = vmatpush1.msra.mxu0 0.0
        %1275 = vmatprep.subr.mxu0 0.0
        %1276 = vmatpush1.msra.mxu0 0.0
        %1277 = vmatprep.subr.mxu0 0.0
        %1278 = vmatpush1.msra.mxu0 0.0
        %1279 = vmatprep.subr.mxu0 0.0
        %1280 = vmatpush1.msra.mxu0 0.0
        %1281 = vmatprep.subr.mxu0 0.0
        %1282 = vmatpush1.msra.mxu0 0.0
        %1283 = vmatprep.subr.mxu0 0.0
        %1284 = vmatpush1.msra.mxu0 0.0
        %1285 = vmatprep.subr.mxu0 0.0
        %1286 = vmatpush1.msra.mxu0 0.0
        %1287 = vmatprep.subr.mxu0 0.0
        %1288 = vmatpush1.msra.mxu0 0.0
        %1289 = vmatprep.subr.mxu0 0.0
        %1290 = vmatpush1.msra.mxu0 0.0
        %1291 = vmatprep.subr.mxu0 0.0
        %1292 = vmatpush1.msra.mxu0 0.0
        %1293 = vmatprep.subr.mxu0 0.0
        %1294 = vmatpush1.msra.mxu0 0.0
        %1295 = vmatprep.subr.mxu0 0.0
        %1296 = vmatpush1.msra.mxu0 0.0
        %1297 = vmatprep.subr.mxu0 0.0
        %1298 = vmatpush1.msra.mxu0 0.0
        %1299 = vmatprep.subr.mxu0 0.0
        %1300 = vmatpush1.msra.mxu0 0.0
        %1301 = vmatprep.subr.mxu0 0.0
        %1302 = vmatpush1.msra.mxu0 0.0
        %1303 = vmatprep.subr.mxu0 0.0
        %1304 = vmatpush1.msra.mxu0 0.0
        %1305 = vmatprep.subr.mxu0 0.0
        %1306 = vmatpush1.msra.mxu0 0.0
        %1307 = vmatprep.subr.mxu0 0.0
        %1308 = vmatpush1.msra.mxu0 0.0
        %1309 = vmatprep.subr.mxu0 0.0
        %1310 = vmatpush1.msra.mxu0 0.0
        %1311 = vmatprep.subr.mxu0 0.0
        %1312 = vmatpush1.msra.mxu0 0.0
        %1313 = vmatprep.subr.mxu0 0.0
        %1314 = vmatpush1.msra.mxu0 0.0
        %1315 = vmatprep.subr.mxu0 0.0
        %1316 = vmatpush1.msra.mxu0 0.0
        %1317 = vmatprep.subr.mxu0 0.0
        %1318 = vmatpush1.msra.mxu0 0.0
        %1319 = vmatprep.subr.mxu0 0.0
        %1320 = vmatpush1.msra.mxu0 0.0
        %1321 = vmatprep.subr.mxu0 0.0
        %1322 = vmatpush1.msra.mxu0 0.0
        %1323 = vmatprep.mubr.f32.mxu0 0.0
        %v1324 = vand.u32 %v1093, 4294901760
        %v1325 = vsub.f32 %v1093, %v1324
        %1326 = vmatmul.mubr.f32.gmra.mrb[0].mxu0 %v1325
        %v1327 = vpop.f32.mrb[0].mxu0
        %v1328 = vadd.f32 %v1251, %v1327
        %v1329 = vpop.f32.mrb[0].mxu0
        %v1330 = vadd.f32 %v1253, %v1329
        %1331 = vdwg.mxu0
        %v1332 = vand.u32 %v1090, 4294901760
        %1333 = vmatprep.subr.mxu0 %v1332
        %v1334 = vand.u32 %v1089, 4294901760
        %1335 = vmatpush1.msra.mxu0 %v1334
        %1336 = vmatprep.subr.mxu0 0.0
        %1337 = vmatpush1.msra.mxu0 0.0
        %1338 = vmatprep.subr.mxu0 0.0
        %1339 = vmatpush1.msra.mxu0 0.0
        %1340 = vmatprep.subr.mxu0 0.0
        %1341 = vmatpush1.msra.mxu0 0.0
        %1342 = vmatprep.subr.mxu0 0.0
        %1343 = vmatpush1.msra.mxu0 0.0
        %1344 = vmatprep.subr.mxu0 0.0
        %1345 = vmatpush1.msra.mxu0 0.0
        %1346 = vmatprep.subr.mxu0 0.0
        %1347 = vmatpush1.msra.mxu0 0.0
        %1348 = vmatprep.subr.mxu0 0.0
        %1349 = vmatpush1.msra.mxu0 0.0
        %1350 = vmatprep.subr.mxu0 0.0
        %1351 = vmatpush1.msra.mxu0 0.0
        %1352 = vmatprep.subr.mxu0 0.0
        %1353 = vmatpush1.msra.mxu0 0.0
        %1354 = vmatprep.subr.mxu0 0.0
        %1355 = vmatpush1.msra.mxu0 0.0
        %1356 = vmatprep.subr.mxu0 0.0
        %1357 = vmatpush1.msra.mxu0 0.0
        %1358 = vmatprep.subr.mxu0 0.0
        %1359 = vmatpush1.msra.mxu0 0.0
        %1360 = vmatprep.subr.mxu0 0.0
        %1361 = vmatpush1.msra.mxu0 0.0
        %1362 = vmatprep.subr.mxu0 0.0
        %1363 = vmatpush1.msra.mxu0 0.0
        %1364 = vmatprep.subr.mxu0 0.0
        %1365 = vmatpush1.msra.mxu0 0.0
        %1366 = vmatprep.subr.mxu0 0.0
        %1367 = vmatpush1.msra.mxu0 0.0
        %1368 = vmatprep.subr.mxu0 0.0
        %1369 = vmatpush1.msra.mxu0 0.0
        %1370 = vmatprep.subr.mxu0 0.0
        %1371 = vmatpush1.msra.mxu0 0.0
        %1372 = vmatprep.subr.mxu0 0.0
        %1373 = vmatpush1.msra.mxu0 0.0
        %1374 = vmatprep.subr.mxu0 0.0
        %1375 = vmatpush1.msra.mxu0 0.0
        %1376 = vmatprep.subr.mxu0 0.0
        %1377 = vmatpush1.msra.mxu0 0.0
        %1378 = vmatprep.subr.mxu0 0.0
        %1379 = vmatpush1.msra.mxu0 0.0
        %1380 = vmatprep.subr.mxu0 0.0
        %1381 = vmatpush1.msra.mxu0 0.0
        %1382 = vmatprep.subr.mxu0 0.0
        %1383 = vmatpush1.msra.mxu0 0.0
        %1384 = vmatprep.subr.mxu0 0.0
        %1385 = vmatpush1.msra.mxu0 0.0
        %1386 = vmatprep.subr.mxu0 0.0
        %1387 = vmatpush1.msra.mxu0 0.0
        %1388 = vmatprep.subr.mxu0 0.0
        %1389 = vmatpush1.msra.mxu0 0.0
        %1390 = vmatprep.subr.mxu0 0.0
        %1391 = vmatpush1.msra.mxu0 0.0
        %1392 = vmatprep.subr.mxu0 0.0
        %1393 = vmatpush1.msra.mxu0 0.0
        %1394 = vmatprep.subr.mxu0 0.0
        %1395 = vmatpush1.msra.mxu0 0.0
        %1396 = vmatprep.subr.mxu0 0.0
        %1397 = vmatpush1.msra.mxu0 0.0
        %1398 = vmatprep.mubr.f32.mxu0 0.0
        %v1399 = vand.u32 %v1093, 4294901760
        %v1400 = vsub.f32 %v1093, %v1399
        %v1401 = vand.u32 %v1400, 4294901760
        %1402 = vmatmul.mubr.f32.gmra.mrb[0].mxu0 %v1401
        %v1403 = vpop.f32.mrb[0].mxu0
        %v1404 = vadd.f32 %v1328, %v1403
        %v1405 = vpop.f32.mrb[0].mxu0
        %v1406 = vadd.f32 %v1330, %v1405
        %1407 = vdwg.mxu0
        %v1408 = vand.u32 %v1090, 4294901760
        %v1409 = vsub.f32 %v1090, %v1408
        %v1410 = vand.u32 %v1409, 4294901760
        %1411 = vmatprep.subr.mxu0 %v1410
        %v1412 = vand.u32 %v1089, 4294901760
        %v1413 = vsub.f32 %v1089, %v1412
        %v1414 = vand.u32 %v1413, 4294901760
        %1415 = vmatpush1.msra.mxu0 %v1414
        %1416 = vmatprep.subr.mxu0 0.0
        %1417 = vmatpush1.msra.mxu0 0.0
        %1418 = vmatprep.subr.mxu0 0.0
        %1419 = vmatpush1.msra.mxu0 0.0
        %1420 = vmatprep.subr.mxu0 0.0
        %1421 = vmatpush1.msra.mxu0 0.0
        %1422 = vmatprep.subr.mxu0 0.0
        %1423 = vmatpush1.msra.mxu0 0.0
        %1424 = vmatprep.subr.mxu0 0.0
        %1425 = vmatpush1.msra.mxu0 0.0
        %1426 = vmatprep.subr.mxu0 0.0
        %1427 = vmatpush1.msra.mxu0 0.0
        %1428 = vmatprep.subr.mxu0 0.0
        %1429 = vmatpush1.msra.mxu0 0.0
        %1430 = vmatprep.subr.mxu0 0.0
        %1431 = vmatpush1.msra.mxu0 0.0
        %1432 = vmatprep.subr.mxu0 0.0
        %1433 = vmatpush1.msra.mxu0 0.0
        %1434 = vmatprep.subr.mxu0 0.0
        %1435 = vmatpush1.msra.mxu0 0.0
        %1436 = vmatprep.subr.mxu0 0.0
        %1437 = vmatpush1.msra.mxu0 0.0
        %1438 = vmatprep.subr.mxu0 0.0
        %1439 = vmatpush1.msra.mxu0 0.0
        %1440 = vmatprep.subr.mxu0 0.0
        %1441 = vmatpush1.msra.mxu0 0.0
        %1442 = vmatprep.subr.mxu0 0.0
        %1443 = vmatpush1.msra.mxu0 0.0
        %1444 = vmatprep.subr.mxu0 0.0
        %1445 = vmatpush1.msra.mxu0 0.0
        %1446 = vmatprep.subr.mxu0 0.0
        %1447 = vmatpush1.msra.mxu0 0.0
        %1448 = vmatprep.subr.mxu0 0.0
        %1449 = vmatpush1.msra.mxu0 0.0
        %1450 = vmatprep.subr.mxu0 0.0
        %1451 = vmatpush1.msra.mxu0 0.0
        %1452 = vmatprep.subr.mxu0 0.0
        %1453 = vmatpush1.msra.mxu0 0.0
        %1454 = vmatprep.subr.mxu0 0.0
        %1455 = vmatpush1.msra.mxu0 0.0
        %1456 = vmatprep.subr.mxu0 0.0
        %1457 = vmatpush1.msra.mxu0 0.0
        %1458 = vmatprep.subr.mxu0 0.0
        %1459 = vmatpush1.msra.mxu0 0.0
        %1460 = vmatprep.subr.mxu0 0.0
        %1461 = vmatpush1.msra.mxu0 0.0
        %1462 = vmatprep.subr.mxu0 0.0
        %1463 = vmatpush1.msra.mxu0 0.0
        %1464 = vmatprep.subr.mxu0 0.0
        %1465 = vmatpush1.msra.mxu0 0.0
        %1466 = vmatprep.subr.mxu0 0.0
        %1467 = vmatpush1.msra.mxu0 0.0
        %1468 = vmatprep.subr.mxu0 0.0
        %1469 = vmatpush1.msra.mxu0 0.0
        %1470 = vmatprep.subr.mxu0 0.0
        %1471 = vmatpush1.msra.mxu0 0.0
        %1472 = vmatprep.subr.mxu0 0.0
        %1473 = vmatpush1.msra.mxu0 0.0
        %1474 = vmatprep.subr.mxu0 0.0
        %1475 = vmatpush1.msra.mxu0 0.0
        %1476 = vmatprep.subr.mxu0 0.0
        %1477 = vmatpush1.msra.mxu0 0.0
        %1478 = vmatprep.mubr.f32.mxu0 0.0
        %v1479 = vand.u32 %v1093, 4294901760
        %1480 = vmatmul.mubr.f32.gmra.mrb[0].mxu0 %v1479
        %v1481 = vpop.f32.mrb[0].mxu0
        %v1482 = vadd.f32 %v1404, %v1481
        %v1483 = vpop.f32.mrb[0].mxu0
        %v1484 = vadd.f32 %v1406, %v1483
        %1485 = vdwg.mxu0
        %v1486 = vand.u32 %v1090, 4294901760
        %1487 = vmatprep.subr.mxu0 %v1486
        %v1488 = vand.u32 %v1089, 4294901760
        %1489 = vmatpush1.msra.mxu0 %v1488
        %1490 = vmatprep.subr.mxu0 0.0
        %1491 = vmatpush1.msra.mxu0 0.0
        %1492 = vmatprep.subr.mxu0 0.0
        %1493 = vmatpush1.msra.mxu0 0.0
        %1494 = vmatprep.subr.mxu0 0.0
        %1495 = vmatpush1.msra.mxu0 0.0
        %1496 = vmatprep.subr.mxu0 0.0
        %1497 = vmatpush1.msra.mxu0 0.0
        %1498 = vmatprep.subr.mxu0 0.0
        %1499 = vmatpush1.msra.mxu0 0.0
        %1500 = vmatprep.subr.mxu0 0.0
        %1501 = vmatpush1.msra.mxu0 0.0
        %1502 = vmatprep.subr.mxu0 0.0
        %1503 = vmatpush1.msra.mxu0 0.0
        %1504 = vmatprep.subr.mxu0 0.0
        %1505 = vmatpush1.msra.mxu0 0.0
        %1506 = vmatprep.subr.mxu0 0.0
        %1507 = vmatpush1.msra.mxu0 0.0
        %1508 = vmatprep.subr.mxu0 0.0
        %1509 = vmatpush1.msra.mxu0 0.0
        %1510 = vmatprep.subr.mxu0 0.0
        %1511 = vmatpush1.msra.mxu0 0.0
        %1512 = vmatprep.subr.mxu0 0.0
        %1513 = vmatpush1.msra.mxu0 0.0
        %1514 = vmatprep.subr.mxu0 0.0
        %1515 = vmatpush1.msra.mxu0 0.0
        %1516 = vmatprep.subr.mxu0 0.0
        %1517 = vmatpush1.msra.mxu0 0.0
        %1518 = vmatprep.subr.mxu0 0.0
        %1519 = vmatpush1.msra.mxu0 0.0
        %1520 = vmatprep.subr.mxu0 0.0
        %1521 = vmatpush1.msra.mxu0 0.0
        %1522 = vmatprep.subr.mxu0 0.0
        %1523 = vmatpush1.msra.mxu0 0.0
        %1524 = vmatprep.subr.mxu0 0.0
        %1525 = vmatpush1.msra.mxu0 0.0
        %1526 = vmatprep.subr.mxu0 0.0
        %1527 = vmatpush1.msra.mxu0 0.0
        %1528 = vmatprep.subr.mxu0 0.0
        %1529 = vmatpush1.msra.mxu0 0.0
        %1530 = vmatprep.subr.mxu0 0.0
        %1531 = vmatpush1.msra.mxu0 0.0
        %1532 = vmatprep.subr.mxu0 0.0
        %1533 = vmatpush1.msra.mxu0 0.0
        %1534 = vmatprep.subr.mxu0 0.0
        %1535 = vmatpush1.msra.mxu0 0.0
        %1536 = vmatprep.subr.mxu0 0.0
        %1537 = vmatpush1.msra.mxu0 0.0
        %1538 = vmatprep.subr.mxu0 0.0
        %1539 = vmatpush1.msra.mxu0 0.0
        %1540 = vmatprep.subr.mxu0 0.0
        %1541 = vmatpush1.msra.mxu0 0.0
        %1542 = vmatprep.subr.mxu0 0.0
        %1543 = vmatpush1.msra.mxu0 0.0
        %1544 = vmatprep.subr.mxu0 0.0
        %1545 = vmatpush1.msra.mxu0 0.0
        %1546 = vmatprep.subr.mxu0 0.0
        %1547 = vmatpush1.msra.mxu0 0.0
        %1548 = vmatprep.subr.mxu0 0.0
        %1549 = vmatpush1.msra.mxu0 0.0
        %1550 = vmatprep.subr.mxu0 0.0
        %1551 = vmatpush1.msra.mxu0 0.0
        %1552 = vmatprep.mubr.f32.mxu0 0.0
        %v1553 = vand.u32 %v1093, 4294901760
        %1554 = vmatmul.mubr.f32.gmra.mrb[0].mxu0 %v1553
        %v1555 = vpop.f32.mrb[0].mxu0
        %v1556 = vadd.f32 %v1482, %v1555
        %v1557 = vpop.f32.mrb[0].mxu0
        %v1558 = vadd.f32 %v1484, %v1557
        %1559 = vdwg.mxu0
        %v1561 = vsel %vm1091, %v1088, 0
        %v1563 = vand.u32 %v1090, 4294901760
        %1564 = vmatprep.subr.mxu0 %v1563
        %v1565 = vand.u32 %v1089, 4294901760
        %1566 = vmatpush1.msra.mxu0 %v1565
        %1567 = vmatprep.subr.mxu0 0.0
        %1568 = vmatpush1.msra.mxu0 0.0
        %1569 = vmatprep.subr.mxu0 0.0
        %1570 = vmatpush1.msra.mxu0 0.0
        %1571 = vmatprep.subr.mxu0 0.0
        %1572 = vmatpush1.msra.mxu0 0.0
        %1573 = vmatprep.subr.mxu0 0.0
        %1574 = vmatpush1.msra.mxu0 0.0
        %1575 = vmatprep.subr.mxu0 0.0
        %1576 = vmatpush1.msra.mxu0 0.0
        %1577 = vmatprep.subr.mxu0 0.0
        %1578 = vmatpush1.msra.mxu0 0.0
        %1579 = vmatprep.subr.mxu0 0.0
        %1580 = vmatpush1.msra.mxu0 0.0
        %1581 = vmatprep.subr.mxu0 0.0
        %1582 = vmatpush1.msra.mxu0 0.0
        %1583 = vmatprep.subr.mxu0 0.0
        %1584 = vmatpush1.msra.mxu0 0.0
        %1585 = vmatprep.subr.mxu0 0.0
        %1586 = vmatpush1.msra.mxu0 0.0
        %1587 = vmatprep.subr.mxu0 0.0
        %1588 = vmatpush1.msra.mxu0 0.0
        %1589 = vmatprep.subr.mxu0 0.0
        %1590 = vmatpush1.msra.mxu0 0.0
        %1591 = vmatprep.subr.mxu0 0.0
        %1592 = vmatpush1.msra.mxu0 0.0
        %1593 = vmatprep.subr.mxu0 0.0
        %1594 = vmatpush1.msra.mxu0 0.0
        %1595 = vmatprep.subr.mxu0 0.0
        %1596 = vmatpush1.msra.mxu0 0.0
        %1597 = vmatprep.subr.mxu0 0.0
        %1598 = vmatpush1.msra.mxu0 0.0
        %1599 = vmatprep.subr.mxu0 0.0
        %1600 = vmatpush1.msra.mxu0 0.0
        %1601 = vmatprep.subr.mxu0 0.0
        %1602 = vmatpush1.msra.mxu0 0.0
        %1603 = vmatprep.subr.mxu0 0.0
        %1604 = vmatpush1.msra.mxu0 0.0
        %1605 = vmatprep.subr.mxu0 0.0
        %1606 = vmatpush1.msra.mxu0 0.0
        %1607 = vmatprep.subr.mxu0 0.0
        %1608 = vmatpush1.msra.mxu0 0.0
        %1609 = vmatprep.subr.mxu0 0.0
        %1610 = vmatpush1.msra.mxu0 0.0
        %1611 = vmatprep.subr.mxu0 0.0
        %1612 = vmatpush1.msra.mxu0 0.0
        %1613 = vmatprep.subr.mxu0 0.0
        %1614 = vmatpush1.msra.mxu0 0.0
        %1615 = vmatprep.subr.mxu0 0.0
        %1616 = vmatpush1.msra.mxu0 0.0
        %1617 = vmatprep.subr.mxu0 0.0
        %1618 = vmatpush1.msra.mxu0 0.0
        %1619 = vmatprep.subr.mxu0 0.0
        %1620 = vmatpush1.msra.mxu0 0.0
        %1621 = vmatprep.subr.mxu0 0.0
        %1622 = vmatpush1.msra.mxu0 0.0
        %1623 = vmatprep.subr.mxu0 0.0
        %1624 = vmatpush1.msra.mxu0 0.0
        %1625 = vmatprep.subr.mxu0 0.0
        %1626 = vmatpush1.msra.mxu0 0.0
        %1627 = vmatprep.subr.mxu0 0.0
        %1628 = vmatpush1.msra.mxu0 0.0
        %1629 = vmatprep.mubr.f32.mxu0 0.0
        %v1630 = vand.u32 %v1561, 4294901760
        %v1631 = vsub.f32 %v1561, %v1630
        %v1632 = vand.u32 %v1631, 4294901760
        %v1633 = vsub.f32 %v1631, %v1632
        %v1634 = vand.u32 %v1633, 4294901760
        %1635 = vmatmul.mubr.f32.gmra.mrb[0].mxu0 %v1634
        %v1636 = vpop.f32.mrb[0].mxu0
        %v1637 = vadd.f32 0.0, %v1636
        %v1638 = vpop.f32.mrb[0].mxu0
        %v1639 = vadd.f32 0.0, %v1638
        %1640 = vdwg.mxu0
        %v1641 = vand.u32 %v1090, 4294901760
        %v1642 = vsub.f32 %v1090, %v1641
        %v1643 = vand.u32 %v1642, 4294901760
        %v1644 = vsub.f32 %v1642, %v1643
        %v1645 = vand.u32 %v1644, 4294901760
        %1646 = vmatprep.subr.mxu0 %v1645
        %v1647 = vand.u32 %v1089, 4294901760
        %v1648 = vsub.f32 %v1089, %v1647
        %v1649 = vand.u32 %v1648, 4294901760
        %v1650 = vsub.f32 %v1648, %v1649
        %v1651 = vand.u32 %v1650, 4294901760
        %1652 = vmatpush1.msra.mxu0 %v1651
        %1653 = vmatprep.subr.mxu0 0.0
        %1654 = vmatpush1.msra.mxu0 0.0
        %1655 = vmatprep.subr.mxu0 0.0
        %1656 = vmatpush1.msra.mxu0 0.0
        %1657 = vmatprep.subr.mxu0 0.0
        %1658 = vmatpush1.msra.mxu0 0.0
        %1659 = vmatprep.subr.mxu0 0.0
        %1660 = vmatpush1.msra.mxu0 0.0
        %1661 = vmatprep.subr.mxu0 0.0
        %1662 = vmatpush1.msra.mxu0 0.0
        %1663 = vmatprep.subr.mxu0 0.0
        %1664 = vmatpush1.msra.mxu0 0.0
        %1665 = vmatprep.subr.mxu0 0.0
        %1666 = vmatpush1.msra.mxu0 0.0
        %1667 = vmatprep.subr.mxu0 0.0
        %1668 = vmatpush1.msra.mxu0 0.0
        %1669 = vmatprep.subr.mxu0 0.0
        %1670 = vmatpush1.msra.mxu0 0.0
        %1671 = vmatprep.subr.mxu0 0.0
        %1672 = vmatpush1.msra.mxu0 0.0
        %1673 = vmatprep.subr.mxu0 0.0
        %1674 = vmatpush1.msra.mxu0 0.0
        %1675 = vmatprep.subr.mxu0 0.0
        %1676 = vmatpush1.msra.mxu0 0.0
        %1677 = vmatprep.subr.mxu0 0.0
        %1678 = vmatpush1.msra.mxu0 0.0
        %1679 = vmatprep.subr.mxu0 0.0
        %1680 = vmatpush1.msra.mxu0 0.0
        %1681 = vmatprep.subr.mxu0 0.0
        %1682 = vmatpush1.msra.mxu0 0.0
        %1683 = vmatprep.subr.mxu0 0.0
        %1684 = vmatpush1.msra.mxu0 0.0
        %1685 = vmatprep.subr.mxu0 0.0
        %1686 = vmatpush1.msra.mxu0 0.0
        %1687 = vmatprep.subr.mxu0 0.0
        %1688 = vmatpush1.msra.mxu0 0.0
        %1689 = vmatprep.subr.mxu0 0.0
        %1690 = vmatpush1.msra.mxu0 0.0
        %1691 = vmatprep.subr.mxu0 0.0
        %1692 = vmatpush1.msra.mxu0 0.0
        %1693 = vmatprep.subr.mxu0 0.0
        %1694 = vmatpush1.msra.mxu0 0.0
        %1695 = vmatprep.subr.mxu0 0.0
        %1696 = vmatpush1.msra.mxu0 0.0
        %1697 = vmatprep.subr.mxu0 0.0
        %1698 = vmatpush1.msra.mxu0 0.0
        %1699 = vmatprep.subr.mxu0 0.0
        %1700 = vmatpush1.msra.mxu0 0.0
        %1701 = vmatprep.subr.mxu0 0.0
        %1702 = vmatpush1.msra.mxu0 0.0
        %1703 = vmatprep.subr.mxu0 0.0
        %1704 = vmatpush1.msra.mxu0 0.0
        %1705 = vmatprep.subr.mxu0 0.0
        %1706 = vmatpush1.msra.mxu0 0.0
        %1707 = vmatprep.subr.mxu0 0.0
        %1708 = vmatpush1.msra.mxu0 0.0
        %1709 = vmatprep.subr.mxu0 0.0
        %1710 = vmatpush1.msra.mxu0 0.0
        %1711 = vmatprep.subr.mxu0 0.0
        %1712 = vmatpush1.msra.mxu0 0.0
        %1713 = vmatprep.subr.mxu0 0.0
        %1714 = vmatpush1.msra.mxu0 0.0
        %1715 = vmatprep.mubr.f32.mxu0 0.0
        %v1716 = vand.u32 %v1561, 4294901760
        %1717 = vmatmul.mubr.f32.gmra.mrb[0].mxu0 %v1716
        %v1718 = vpop.f32.mrb[0].mxu0
        %v1719 = vadd.f32 %v1637, %v1718
        %v1720 = vpop.f32.mrb[0].mxu0
        %v1721 = vadd.f32 %v1639, %v1720
        %1722 = vdwg.mxu0
        %v1723 = vand.u32 %v1090, 4294901760
        %v1724 = vsub.f32 %v1090, %v1723
        %1725 = vmatprep.subr.mxu0 %v1724
        %v1726 = vand.u32 %v1089, 4294901760
        %v1727 = vsub.f32 %v1089, %v1726
        %1728 = vmatpush1.msra.mxu0 %v1727
        %1729 = vmatprep.subr.mxu0 0.0
        %1730 = vmatpush1.msra.mxu0 0.0
        %1731 = vmatprep.subr.mxu0 0.0
        %1732 = vmatpush1.msra.mxu0 0.0
        %1733 = vmatprep.subr.mxu0 0.0
        %1734 = vmatpush1.msra.mxu0 0.0
        %1735 = vmatprep.subr.mxu0 0.0
        %1736 = vmatpush1.msra.mxu0 0.0
        %1737 = vmatprep.subr.mxu0 0.0
        %1738 = vmatpush1.msra.mxu0 0.0
        %1739 = vmatprep.subr.mxu0 0.0
        %1740 = vmatpush1.msra.mxu0 0.0
        %1741 = vmatprep.subr.mxu0 0.0
        %1742 = vmatpush1.msra.mxu0 0.0
        %1743 = vmatprep.subr.mxu0 0.0
        %1744 = vmatpush1.msra.mxu0 0.0
        %1745 = vmatprep.subr.mxu0 0.0
        %1746 = vmatpush1.msra.mxu0 0.0
        %1747 = vmatprep.subr.mxu0 0.0
        %1748 = vmatpush1.msra.mxu0 0.0
        %1749 = vmatprep.subr.mxu0 0.0
        %1750 = vmatpush1.msra.mxu0 0.0
        %1751 = vmatprep.subr.mxu0 0.0
        %1752 = vmatpush1.msra.mxu0 0.0
        %1753 = vmatprep.subr.mxu0 0.0
        %1754 = vmatpush1.msra.mxu0 0.0
        %1755 = vmatprep.subr.mxu0 0.0
        %1756 = vmatpush1.msra.mxu0 0.0
        %1757 = vmatprep.subr.mxu0 0.0
        %1758 = vmatpush1.msra.mxu0 0.0
        %1759 = vmatprep.subr.mxu0 0.0
        %1760 = vmatpush1.msra.mxu0 0.0
        %1761 = vmatprep.subr.mxu0 0.0
        %1762 = vmatpush1.msra.mxu0 0.0
        %1763 = vmatprep.subr.mxu0 0.0
        %1764 = vmatpush1.msra.mxu0 0.0
        %1765 = vmatprep.subr.mxu0 0.0
        %1766 = vmatpush1.msra.mxu0 0.0
        %1767 = vmatprep.subr.mxu0 0.0
        %1768 = vmatpush1.msra.mxu0 0.0
        %1769 = vmatprep.subr.mxu0 0.0
        %1770 = vmatpush1.msra.mxu0 0.0
        %1771 = vmatprep.subr.mxu0 0.0
        %1772 = vmatpush1.msra.mxu0 0.0
        %1773 = vmatprep.subr.mxu0 0.0
        %1774 = vmatpush1.msra.mxu0 0.0
        %1775 = vmatprep.subr.mxu0 0.0
        %1776 = vmatpush1.msra.mxu0 0.0
        %1777 = vmatprep.subr.mxu0 0.0
        %1778 = vmatpush1.msra.mxu0 0.0
        %1779 = vmatprep.subr.mxu0 0.0
        %1780 = vmatpush1.msra.mxu0 0.0
        %1781 = vmatprep.subr.mxu0 0.0
        %1782 = vmatpush1.msra.mxu0 0.0
        %1783 = vmatprep.subr.mxu0 0.0
        %1784 = vmatpush1.msra.mxu0 0.0
        %1785 = vmatprep.subr.mxu0 0.0
        %1786 = vmatpush1.msra.mxu0 0.0
        %1787 = vmatprep.subr.mxu0 0.0
        %1788 = vmatpush1.msra.mxu0 0.0
        %1789 = vmatprep.subr.mxu0 0.0
        %1790 = vmatpush1.msra.mxu0 0.0
        %1791 = vmatprep.mubr.f32.mxu0 0.0
        %v1792 = vand.u32 %v1561, 4294901760
        %v1793 = vsub.f32 %v1561, %v1792
        %1794 = vmatmul.mubr.f32.gmra.mrb[0].mxu0 %v1793
        %v1795 = vpop.f32.mrb[0].mxu0
        %v1796 = vadd.f32 %v1719, %v1795
        %v1797 = vpop.f32.mrb[0].mxu0
        %v1798 = vadd.f32 %v1721, %v1797
        %1799 = vdwg.mxu0
        %v1800 = vand.u32 %v1090, 4294901760
        %1801 = vmatprep.subr.mxu0 %v1800
        %v1802 = vand.u32 %v1089, 4294901760
        %1803 = vmatpush1.msra.mxu0 %v1802
        %1804 = vmatprep.subr.mxu0 0.0
        %1805 = vmatpush1.msra.mxu0 0.0
        %1806 = vmatprep.subr.mxu0 0.0
        %1807 = vmatpush1.msra.mxu0 0.0
        %1808 = vmatprep.subr.mxu0 0.0
        %1809 = vmatpush1.msra.mxu0 0.0
        %1810 = vmatprep.subr.mxu0 0.0
        %1811 = vmatpush1.msra.mxu0 0.0
        %1812 = vmatprep.subr.mxu0 0.0
        %1813 = vmatpush1.msra.mxu0 0.0
        %1814 = vmatprep.subr.mxu0 0.0
        %1815 = vmatpush1.msra.mxu0 0.0
        %1816 = vmatprep.subr.mxu0 0.0
        %1817 = vmatpush1.msra.mxu0 0.0
        %1818 = vmatprep.subr.mxu0 0.0
        %1819 = vmatpush1.msra.mxu0 0.0
        %1820 = vmatprep.subr.mxu0 0.0
        %1821 = vmatpush1.msra.mxu0 0.0
        %1822 = vmatprep.subr.mxu0 0.0
        %1823 = vmatpush1.msra.mxu0 0.0
        %1824 = vmatprep.subr.mxu0 0.0
        %1825 = vmatpush1.msra.mxu0 0.0
        %1826 = vmatprep.subr.mxu0 0.0
        %1827 = vmatpush1.msra.mxu0 0.0
        %1828 = vmatprep.subr.mxu0 0.0
        %1829 = vmatpush1.msra.mxu0 0.0
        %1830 = vmatprep.subr.mxu0 0.0
        %1831 = vmatpush1.msra.mxu0 0.0
        %1832 = vmatprep.subr.mxu0 0.0
        %1833 = vmatpush1.msra.mxu0 0.0
        %1834 = vmatprep.subr.mxu0 0.0
        %1835 = vmatpush1.msra.mxu0 0.0
        %1836 = vmatprep.subr.mxu0 0.0
        %1837 = vmatpush1.msra.mxu0 0.0
        %1838 = vmatprep.subr.mxu0 0.0
        %1839 = vmatpush1.msra.mxu0 0.0
        %1840 = vmatprep.subr.mxu0 0.0
        %1841 = vmatpush1.msra.mxu0 0.0
        %1842 = vmatprep.subr.mxu0 0.0
        %1843 = vmatpush1.msra.mxu0 0.0
        %1844 = vmatprep.subr.mxu0 0.0
        %1845 = vmatpush1.msra.mxu0 0.0
        %1846 = vmatprep.subr.mxu0 0.0
        %1847 = vmatpush1.msra.mxu0 0.0
        %1848 = vmatprep.subr.mxu0 0.0
        %1849 = vmatpush1.msra.mxu0 0.0
        %1850 = vmatprep.subr.mxu0 0.0
        %1851 = vmatpush1.msra.mxu0 0.0
        %1852 = vmatprep.subr.mxu0 0.0
        %1853 = vmatpush1.msra.mxu0 0.0
        %1854 = vmatprep.subr.mxu0 0.0
        %1855 = vmatpush1.msra.mxu0 0.0
        %1856 = vmatprep.subr.mxu0 0.0
        %1857 = vmatpush1.msra.mxu0 0.0
        %1858 = vmatprep.subr.mxu0 0.0
        %1859 = vmatpush1.msra.mxu0 0.0
        %1860 = vmatprep.subr.mxu0 0.0
        %1861 = vmatpush1.msra.mxu0 0.0
        %1862 = vmatprep.subr.mxu0 0.0
        %1863 = vmatpush1.msra.mxu0 0.0
        %1864 = vmatprep.subr.mxu0 0.0
        %1865 = vmatpush1.msra.mxu0 0.0
        %1866 = vmatprep.mubr.f32.mxu0 0.0
        %v1867 = vand.u32 %v1561, 4294901760
        %v1868 = vsub.f32 %v1561, %v1867
        %v1869 = vand.u32 %v1868, 4294901760
        %1870 = vmatmul.mubr.f32.gmra.mrb[0].mxu0 %v1869
        %v1871 = vpop.f32.mrb[0].mxu0
        %v1872 = vadd.f32 %v1796, %v1871
        %v1873 = vpop.f32.mrb[0].mxu0
        %v1874 = vadd.f32 %v1798, %v1873
        %1875 = vdwg.mxu0
        %v1876 = vand.u32 %v1090, 4294901760
        %v1877 = vsub.f32 %v1090, %v1876
        %v1878 = vand.u32 %v1877, 4294901760
        %1879 = vmatprep.subr.mxu0 %v1878
        %v1880 = vand.u32 %v1089, 4294901760
        %v1881 = vsub.f32 %v1089, %v1880
        %v1882 = vand.u32 %v1881, 4294901760
        %1883 = vmatpush1.msra.mxu0 %v1882
        %1884 = vmatprep.subr.mxu0 0.0
        %1885 = vmatpush1.msra.mxu0 0.0
        %1886 = vmatprep.subr.mxu0 0.0
        %1887 = vmatpush1.msra.mxu0 0.0
        %1888 = vmatprep.subr.mxu0 0.0
        %1889 = vmatpush1.msra.mxu0 0.0
        %1890 = vmatprep.subr.mxu0 0.0
        %1891 = vmatpush1.msra.mxu0 0.0
        %1892 = vmatprep.subr.mxu0 0.0
        %1893 = vmatpush1.msra.mxu0 0.0
        %1894 = vmatprep.subr.mxu0 0.0
        %1895 = vmatpush1.msra.mxu0 0.0
        %1896 = vmatprep.subr.mxu0 0.0
        %1897 = vmatpush1.msra.mxu0 0.0
        %1898 = vmatprep.subr.mxu0 0.0
        %1899 = vmatpush1.msra.mxu0 0.0
        %1900 = vmatprep.subr.mxu0 0.0
        %1901 = vmatpush1.msra.mxu0 0.0
        %1902 = vmatprep.subr.mxu0 0.0
        %1903 = vmatpush1.msra.mxu0 0.0
        %1904 = vmatprep.subr.mxu0 0.0
        %1905 = vmatpush1.msra.mxu0 0.0
        %1906 = vmatprep.subr.mxu0 0.0
        %1907 = vmatpush1.msra.mxu0 0.0
        %1908 = vmatprep.subr.mxu0 0.0
        %1909 = vmatpush1.msra.mxu0 0.0
        %1910 = vmatprep.subr.mxu0 0.0
        %1911 = vmatpush1.msra.mxu0 0.0
        %1912 = vmatprep.subr.mxu0 0.0
        %1913 = vmatpush1.msra.mxu0 0.0
        %1914 = vmatprep.subr.mxu0 0.0
        %1915 = vmatpush1.msra.mxu0 0.0
        %1916 = vmatprep.subr.mxu0 0.0
        %1917 = vmatpush1.msra.mxu0 0.0
        %1918 = vmatprep.subr.mxu0 0.0
        %1919 = vmatpush1.msra.mxu0 0.0
        %1920 = vmatprep.subr.mxu0 0.0
        %1921 = vmatpush1.msra.mxu0 0.0
        %1922 = vmatprep.subr.mxu0 0.0
        %1923 = vmatpush1.msra.mxu0 0.0
        %1924 = vmatprep.subr.mxu0 0.0
        %1925 = vmatpush1.msra.mxu0 0.0
        %1926 = vmatprep.subr.mxu0 0.0
        %1927 = vmatpush1.msra.mxu0 0.0
        %1928 = vmatprep.subr.mxu0 0.0
        %1929 = vmatpush1.msra.mxu0 0.0
        %1930 = vmatprep.subr.mxu0 0.0
        %1931 = vmatpush1.msra.mxu0 0.0
        %1932 = vmatprep.subr.mxu0 0.0
        %1933 = vmatpush1.msra.mxu0 0.0
        %1934 = vmatprep.subr.mxu0 0.0
        %1935 = vmatpush1.msra.mxu0 0.0
        %1936 = vmatprep.subr.mxu0 0.0
        %1937 = vmatpush1.msra.mxu0 0.0
        %1938 = vmatprep.subr.mxu0 0.0
        %1939 = vmatpush1.msra.mxu0 0.0
        %1940 = vmatprep.subr.mxu0 0.0
        %1941 = vmatpush1.msra.mxu0 0.0
        %1942 = vmatprep.subr.mxu0 0.0
        %1943 = vmatpush1.msra.mxu0 0.0
        %1944 = vmatprep.subr.mxu0 0.0
        %1945 = vmatpush1.msra.mxu0 0.0
        %1946 = vmatprep.mubr.f32.mxu0 0.0
        %v1947 = vand.u32 %v1561, 4294901760
        %1948 = vmatmul.mubr.f32.gmra.mrb[0].mxu0 %v1947
        %v1949 = vpop.f32.mrb[0].mxu0
        %v1950 = vadd.f32 %v1872, %v1949
        %v1951 = vpop.f32.mrb[0].mxu0
        %v1952 = vadd.f32 %v1874, %v1951
        %1953 = vdwg.mxu0
        %v1954 = vand.u32 %v1090, 4294901760
        %1955 = vmatprep.subr.mxu0 %v1954
        %v1956 = vand.u32 %v1089, 4294901760
        %1957 = vmatpush1.msra.mxu0 %v1956
        %1958 = vmatprep.subr.mxu0 0.0
        %1959 = vmatpush1.msra.mxu0 0.0
        %1960 = vmatprep.subr.mxu0 0.0
        %1961 = vmatpush1.msra.mxu0 0.0
        %1962 = vmatprep.subr.mxu0 0.0
        %1963 = vmatpush1.msra.mxu0 0.0
        %1964 = vmatprep.subr.mxu0 0.0
        %1965 = vmatpush1.msra.mxu0 0.0
        %1966 = vmatprep.subr.mxu0 0.0
        %1967 = vmatpush1.msra.mxu0 0.0
        %1968 = vmatprep.subr.mxu0 0.0
        %1969 = vmatpush1.msra.mxu0 0.0
        %1970 = vmatprep.subr.mxu0 0.0
        %1971 = vmatpush1.msra.mxu0 0.0
        %1972 = vmatprep.subr.mxu0 0.0
        %1973 = vmatpush1.msra.mxu0 0.0
        %1974 = vmatprep.subr.mxu0 0.0
        %1975 = vmatpush1.msra.mxu0 0.0
        %1976 = vmatprep.subr.mxu0 0.0
        %1977 = vmatpush1.msra.mxu0 0.0
        %1978 = vmatprep.subr.mxu0 0.0
        %1979 = vmatpush1.msra.mxu0 0.0
        %1980 = vmatprep.subr.mxu0 0.0
        %1981 = vmatpush1.msra.mxu0 0.0
        %1982 = vmatprep.subr.mxu0 0.0
        %1983 = vmatpush1.msra.mxu0 0.0
        %1984 = vmatprep.subr.mxu0 0.0
        %1985 = vmatpush1.msra.mxu0 0.0
        %1986 = vmatprep.subr.mxu0 0.0
        %1987 = vmatpush1.msra.mxu0 0.0
        %1988 = vmatprep.subr.mxu0 0.0
        %1989 = vmatpush1.msra.mxu0 0.0
        %1990 = vmatprep.subr.mxu0 0.0
        %1991 = vmatpush1.msra.mxu0 0.0
        %1992 = vmatprep.subr.mxu0 0.0
        %1993 = vmatpush1.msra.mxu0 0.0
        %1994 = vmatprep.subr.mxu0 0.0
        %1995 = vmatpush1.msra.mxu0 0.0
        %1996 = vmatprep.subr.mxu0 0.0
        %1997 = vmatpush1.msra.mxu0 0.0
        %1998 = vmatprep.subr.mxu0 0.0
        %1999 = vmatpush1.msra.mxu0 0.0
        %2000 = vmatprep.subr.mxu0 0.0
        %2001 = vmatpush1.msra.mxu0 0.0
        %2002 = vmatprep.subr.mxu0 0.0
        %2003 = vmatpush1.msra.mxu0 0.0
        %2004 = vmatprep.subr.mxu0 0.0
        %2005 = vmatpush1.msra.mxu0 0.0
        %2006 = vmatprep.subr.mxu0 0.0
        %2007 = vmatpush1.msra.mxu0 0.0
        %2008 = vmatprep.subr.mxu0 0.0
        %2009 = vmatpush1.msra.mxu0 0.0
        %2010 = vmatprep.subr.mxu0 0.0
        %2011 = vmatpush1.msra.mxu0 0.0
        %2012 = vmatprep.subr.mxu0 0.0
        %2013 = vmatpush1.msra.mxu0 0.0
        %2014 = vmatprep.subr.mxu0 0.0
        %2015 = vmatpush1.msra.mxu0 0.0
        %2016 = vmatprep.subr.mxu0 0.0
        %2017 = vmatpush1.msra.mxu0 0.0
        %2018 = vmatprep.subr.mxu0 0.0
        %2019 = vmatpush1.msra.mxu0 0.0
        %2020 = vmatprep.mubr.f32.mxu0 0.0
        %v2021 = vand.u32 %v1561, 4294901760
        %2022 = vmatmul.mubr.f32.gmra.mrb[0].mxu0 %v2021
        %v2023 = vpop.f32.mrb[0].mxu0
        %v2024 = vadd.f32 %v1950, %v2023
        %v2025 = vpop.f32.mrb[0].mxu0
        %v2026 = vadd.f32 %v1952, %v2025
        %2027 = vdwg.mxu0
        %v2028 = vmul.f32 %v1556, %v169
        %v2029 = vmul.f32 %v1558, %v203
        %vm2030 = vcmask 1043456
        %v2031 = vsel %vm2030, %v2028, 0.0
        %v2032 = vrot.slane %v2031, 4
        %v2033 = vadd.f32 %v2031, %v2032
        %v2034 = vrot.slane %v2033, 2
        %v2035 = vadd.f32 %v2033, %v2034
        %v2036 = vrot.slane %v2035, 1
        %v2037 = vadd.f32 %v2035, %v2036
        %v2038 = vsel %vm2030, %v2029, 0.0
        %v2039 = vrot.slane %v2038, 4
        %v2040 = vadd.f32 %v2038, %v2039
        %v2041 = vrot.slane %v2040, 2
        %v2042 = vadd.f32 %v2040, %v2041
        %v2043 = vrot.slane %v2042, 1
        %v2044 = vadd.f32 %v2042, %v2043
        %v2045 = vmul.f32 %v2037, %v2024
        %v2046 = vmul.f32 %v2044, %v2026
        %v2049 = vcombine.low %v2045, %v2046
        %v2051 = vunpack.c.l.s4 1966171168
        %v2052 = vunpack.c.0.s8 %v2051
        %v2053 = vlaneseq
        %v2054 = vshrl.u32 %v2053, 7
        %v2055 = vsub.s32 %v2052, %v2054
        %v2056 = vrot.slane %v2049, %v2055
        %v2058 = vunpack.c.l.s4 1966171168
        %v2059 = vunpack.c.0.s8 %v2058
        %v2060 = vlaneseq
        %v2061 = vshrl.u32 %v2060, 7
        %v2062 = vsub.s32 %v2059, %v2061
        %v2063 = vrot.slane %v2056, %v2062
        %v2065 = vlaneseq
        %vm2066 = vcmp.ge.s32.totalorder %v2065, 0
        %vm2067 = vcmp.lt.s32.totalorder %v2065, 256
        %vm2068 = vmand %vm2066, %vm2067
        %2069 = vst.msk [vmem:[%s163] sm:$0x3] %vm2068, %v2063
        %s2070 = sand.u32 %s93, 1
        %s2071 = scalar_lea.sflag [#allocation3], %s2070
        %s2072 = sand.u32 %s93, 1
        %s2073 = smul.addr %s2072, 2
        %s2074 = scalar_lea.vmem [#allocation2], %s2073
        // Predicated region
        $region33: #{tpu_custom_call.1} parent=31 // pred_check
          %p2075 = pneg %p103
        $region34: #{tpu_custom_call.1} parent=31 // pred_check_branch
          %2077 = sbr.rel (%p2075) target = $region36
        $region35: #{tpu_custom_call.1} parent=31 // pred_region
          %s2079 = ssub.s32 32, 32
          %2080 = vsyncadd %s2071, %s2079
          %s2081 = smul.addr %s17, 2
          %s2082 = smul.addr %s2081, 16
          %s2083 = scalar_lea.hbm %s3, %s2082
          %s2085 = sshll.u32 %s2074, 4
          %s2086 = int_to_ptr.vmem [resolvable:$true] %s2085
          %2088 = dma.vmem_to_hbm [thread:$0]  %s2086, 32, %s2083, %s2071
        $region36: #{tpu_custom_call.1} parent=31 // pred_fallthru
          _
      $region32: #{tpu_custom_call.1} parent=5 // pred_fallthru
        _
      %p2089 = scmp.le.s32.totalorder 2, %s12
      // Predicated region
      $region37: #{tpu_custom_call.1} parent=5 // pred_check
        %p2090 = pneg %p2089
      $region38: #{tpu_custom_call.1} parent=5 // pred_check_branch
        %2092 = sbr.rel (%p2090) target = $region40
      $region39: #{tpu_custom_call.1} parent=5 // pred_region
        %s2093 = ssub.s32 %s12, 2
        // Predicated region
        $region41: #{tpu_custom_call.1} parent=39 // pred_check
          %p2094 = pneg %p109
        $region42: #{tpu_custom_call.1} parent=39 // pred_check_branch
          %2096 = sbr.rel (%p2094) target = $region44
        $region43: #{tpu_custom_call.1} parent=39 // pred_region
          %s2097 = sand.u32 %s94, 1
          %s2098 = scalar_lea.sflag [#allocation3], %s2097
          %s2099 = sand.u32 %s94, 1
          %s2100 = smul.addr %s2099, 2
          %s2101 = scalar_lea.vmem [#allocation2], %s2100
          %2102 = dma.done %s2098, 32
        $region44: #{tpu_custom_call.1} parent=39 // pred_fallthru
          _
      $region40: #{tpu_custom_call.1} parent=5 // pred_fallthru
        _
    $region6: #{tpu_custom_call.1} parent=1 // loop_footer
      %s16 = sadd.s32 1, %s12
    $region7: #{tpu_custom_call.1} parent=1 // loop_footer_branch
      %11 = sbr.rel target = $region3
    $region8: #{tpu_custom_call.1} parent=1 // loop_exit
      _
    %2103 = vsyncpa [#allocation3], 1
    %s2104 = scalar_lea.sflag [#allocation3], 1
    %2105 = vsyncpa %s2104, 1

</llo_original>
